<compile_context>
chip_gen: v7x
topology: tpu7x:2x2x1
jax: 0.10.0
libtpu: 0.0.40
codegen_flags: <defaults>
</compile_context>

<pallas_src>
import functools

import jax
import jax.numpy as jnp
from jax import lax
from jax.experimental import pallas as pl
from jax.experimental.pallas import tpu as pltpu


# ----------------------------------------------------------------------------
# tile pickers
# ----------------------------------------------------------------------------
def _pick_f_tile(F, block_f):
    """Largest multiple-of-128 divisor of F (F already padded to %128==0)."""
    tf = max(128, (min(block_f, F) // 128) * 128)
    while F % tf != 0:
        tf -= 128
    return tf


def _pick_k_tile(K, block_k):
    """Multiple-of-128 divisor of K, big enough to amortize per-step overhead
    but keeping >= 2 tiles so both v7x TensorCores get work."""
    assert K % 128 == 0, "queue size must be a multiple of 128"
    tk = max(128, (min(block_k, K) // 128) * 128)
    while K % tk != 0:
        tk -= 128
    if K // tk < 2 and K >= 256:
        tk = max(128, tk // 2)
        while K % tk != 0:
            tk -= 128
    return tk


# ----------------------------------------------------------------------------
# Kernel 1: fused q/k encoder ("fc" head) + momentum update of the key weight
#           + L2 normalization + l_pos.
#   grid axis 0 streams the F (reduction) dimension; q/k outputs have a
#   constant index_map so they stay VMEM-resident and act as f32 accumulators.
# ----------------------------------------------------------------------------
def _fused_encoder_kernel(xq_ref, xk_ref, wq_ref, wk_ref, bq_ref, bk_ref,
                          qn_ref, kn_ref, wk_new_ref, lpos_ref, *, m, inv_t):
    f = pl.program_id(0)

    @pl.when(f == 0)
    def _init():
        qn_ref[...] = jnp.zeros_like(qn_ref)
        kn_ref[...] = jnp.zeros_like(kn_ref)

    # momentum update of this (tf, D) weight tile (f32 master), fused with the
    # key forward pass -- saves a full weight HBM round trip per step.
    wq = wq_ref[...]
    wk_new = wk_ref[...] * m + wq * (1.0 - m)
    wk_new_ref[...] = wk_new

    # MXU gets bf16 operands (f32 accumulation); the f32 masters were streamed
    # anyway for the momentum math, so the cast costs no extra HBM traffic.
    qn_ref[...] += jnp.dot(xq_ref[...].astype(jnp.bfloat16),
                           wq.astype(jnp.bfloat16),
                           preferred_element_type=jnp.float32)
    kn_ref[...] += jnp.dot(xk_ref[...].astype(jnp.bfloat16),
                           wk_new.astype(jnp.bfloat16),
                           preferred_element_type=jnp.float32)

    @pl.when(f == pl.num_programs(0) - 1)
    def _finalize():
        eps2 = 1e-24  # matches F.normalize eps=1e-12 on the norm
        q = qn_ref[...] + bq_ref[...]
        k = kn_ref[...] + bk_ref[...]
        q = q * lax.rsqrt(jnp.maximum(jnp.sum(q * q, axis=1, keepdims=True), eps2))
        k = k * lax.rsqrt(jnp.maximum(jnp.sum(k * k, axis=1, keepdims=True), eps2))
        qn_ref[...] = q
        kn_ref[...] = k
        lpos_ref[...] = jnp.sum(q * k, axis=1, keepdims=True) * inv_t


def fused_encoder_step(xq, xk, wq, wk, bq, bk, m, T, *, block_f=512):
    N, F = xq.shape
    D = wq.shape[1]

    # pad F to a multiple of 128 (zero padding contributes nothing to the dot;
    # padded wk rows are sliced back off) instead of silently compiling one
    # enormous full-F block that can blow v7x's VMEM.
    Fp = ((F + 127) // 128) * 128
    if Fp != F:
        xq = jnp.pad(xq, ((0, 0), (0, Fp - F)))
        xk = jnp.pad(xk, ((0, 0), (0, Fp - F)))
        wq = jnp.pad(wq, ((0, Fp - F), (0, 0)))
        wk = jnp.pad(wk, ((0, Fp - F), (0, 0)))

    tf = _pick_f_tile(Fp, block_f)
    grid = (Fp // tf,)

    qn, kn, wk_new, l_pos = pl.pallas_call(
        functools.partial(_fused_encoder_kernel, m=m, inv_t=1.0 / T),
        out_shape=(jax.ShapeDtypeStruct((N, D), jnp.float32),   # qn
                   jax.ShapeDtypeStruct((N, D), jnp.float32),   # kn
                   jax.ShapeDtypeStruct((Fp, D), jnp.float32),  # wk_new
                   jax.ShapeDtypeStruct((N, 1), jnp.float32)),  # l_pos
        grid_spec=pltpu.PrefetchScalarGridSpec(
            num_scalar_prefetch=0,
            grid=grid,
            in_specs=[
                pl.BlockSpec((N, tf), lambda f: (0, f)),   # xq
                pl.BlockSpec((N, tf), lambda f: (0, f)),   # xk
                pl.BlockSpec((tf, D), lambda f: (f, 0)),   # wq (f32 master)
                pl.BlockSpec((tf, D), lambda f: (f, 0)),   # wk (f32 master)
                pl.BlockSpec((1, D), lambda f: (0, 0)),    # bq
                pl.BlockSpec((1, D), lambda f: (0, 0)),    # bk (pre-updated)
            ],
            out_specs=(pl.BlockSpec((N, D), lambda f: (0, 0)),
                       pl.BlockSpec((N, D), lambda f: (0, 0)),
                       pl.BlockSpec((tf, D), lambda f: (f, 0)),
                       pl.BlockSpec((N, 1), lambda f: (0, 0))),
        ),
        compiler_params=pltpu.CompilerParams(
            dimension_semantics=("arbitrary",)),
    )(xq, xk, wq, wk, bq, bk)

    if Fp != F:
        wk_new = wk_new[:F]
    return qn, kn, wk_new, l_pos


# ----------------------------------------------------------------------------
# Kernel 2: l_neg = (qn @ queue^T) / T.
#   queue stored (K, D) bf16, streamed in lane-dense (tk, D) tiles, contracted
#   on D; lane-dense (N, tk) f32 output tiles on a 'parallel' K axis.
# ----------------------------------------------------------------------------
def _lneg_kernel(qn_ref, queue_ref, lneg_ref, *, inv_t):
    lneg_ref[...] = lax.dot_general(
        qn_ref[...], queue_ref[...],
        dimension_numbers=(((1,), (1,)), ((), ())),
        preferred_element_type=jnp.float32) * inv_t


def pallas_l_neg(qn_bf16, queue_kd_bf16, T, *, block_k=8192):
    N, D = qn_bf16.shape
    K = queue_kd_bf16.shape[0]
    tk = _pick_k_tile(K, block_k)
    return pl.pallas_call(
        functools.partial(_lneg_kernel, inv_t=1.0 / T),
        out_shape=jax.ShapeDtypeStruct((N, K), jnp.float32),
        grid_spec=pltpu.PrefetchScalarGridSpec(
            num_scalar_prefetch=0,
            grid=(K // tk,),
            in_specs=[pl.BlockSpec((N, D), lambda j: (0, 0)),
                      pl.BlockSpec((tk, D), lambda j: (j, 0))],
            out_specs=pl.BlockSpec((N, tk), lambda j: (0, j)),
        ),
        compiler_params=pltpu.CompilerParams(
            dimension_semantics=("parallel",)),
    )(qn_bf16, queue_kd_bf16)


# ----------------------------------------------------------------------------
# Queue enqueue: in-place (donated) lane-dense row-slab write into (K, D).
# ----------------------------------------------------------------------------
@functools.partial(jax.jit, donate_argnums=(0,))
def _enqueue(queue_kd, keys_bf16, ptr):
    return lax.dynamic_update_slice(queue_kd, keys_bf16, (ptr, 0))


# ----------------------------------------------------------------------------
# MoCo forward (world_size = 1, swap=False path of the PyTorch module)
# ----------------------------------------------------------------------------
class MoCoPallas:
    def __init__(self, key, in_features, dim=128, K=512, m=0.999, T=0.07,
                 enc_block_f=512, head_block_k=8192):
        self.K, self.m, self.T = K, m, T
        self.enc_block_f = enc_block_f
        self.head_block_k = head_block_k

        k_w, k_b, k_q = jax.random.split(key, 3)
        scale = 1.0 / jnp.sqrt(jnp.float32(in_features))
        # query encoder params ("fc" head of the injected base_encoder)
        self.wq = jax.random.uniform(
            k_w, (in_features, dim), jnp.float32, -scale, scale)
        self.bq = jax.random.uniform(k_b, (1, dim), jnp.float32, -scale, scale)
        # key encoder params: copy of the query encoder params (f32 masters)
        self.wk = self.wq
        self.bk = self.bq
        # queue buffer: logical (dim, K) randn normalized along dim=0; stored
        # transposed as (K, dim) bf16 so streaming and enqueue are lane-dense.
        queue = jax.random.normal(k_q, (K, dim), jnp.float32)
        queue = queue / jnp.maximum(
            jnp.sqrt(jnp.sum(queue * queue, axis=1, keepdims=True)), 1e-12)
        self.queue = queue.astype(jnp.bfloat16)
        self.queue_ptr = 0

    def forward(self, im_q, im_k):
        N = im_q.shape[0]
        xq = im_q.reshape(N, -1).astype(jnp.float32)
        xk = im_k.reshape(N, -1).astype(jnp.float32)

        # momentum update: the weight update is fused into the encoder kernel;
        # only the tiny (1, D) bias update is done here (a launch would be
        # pure overhead).  No 5-D params exist -> always the `m` branch.
        self.bk = self.bk * self.m + self.bq * (1.0 - self.m)

        # DDP batch shuffle/unshuffle is the identity at world_size == 1 for a
        # per-row encoder (no BatchNorm) and is skipped.
        # TODO(synk): multi-device path (concat_all_gather + batch shuffle via
        #             scalar-prefetched idx_shuffle in the encoder index_map).

        # fused q/k encoder forward + momentum weight update + L2 norm + l_pos
        qn, kn, wk_new, l_pos = fused_encoder_step(
            xq, xk, self.wq, self.wk, self.bq, self.bk, self.m, self.T,
            block_f=self.enc_block_f)
        self.wk = wk_new

        # contrastive negatives against the queue
        l_neg = pallas_l_neg(qn.astype(jnp.bfloat16), self.queue, self.T,
                             block_k=self.head_block_k)              # (N, K)

        # TODO(synk): for production K (65536) write l_neg into a pre-allocated
        # lane-aligned logits buffer instead of concatenating a 1-wide column.
        logits = jnp.concatenate([l_pos, l_neg], axis=1)
        labels = jnp.zeros((N,), dtype=jnp.int32)

        # dequeue and enqueue (in-place donated lane-dense row-slab write)
        assert self.K % N == 0
        self.queue = _enqueue(self.queue, kn.astype(self.queue.dtype),
                              jnp.int32(self.queue_ptr))
        self.queue_ptr = (self.queue_ptr + N) % self.K

        return logits, labels


# ----------------------------------------------------------------------------
if __name__ == "__main__":
    key = jax.random.PRNGKey(0)
    k_params, k_q, k_k = jax.random.split(key, 3)

    N, C, H, W = 8, 4, 16, 16
    DIM, K_QUEUE = 128, 512

    im_q = jax.random.normal(k_q, (N, C, H, W), jnp.float32)
    im_k = jax.random.normal(k_k, (N, C, H, W), jnp.float32)

    model = MoCoPallas(k_params, in_features=C * H * W, dim=DIM, K=K_QUEUE)

    # snapshot params / queue before the step for the pure-JAX reference
    wq0, bq0 = model.wq, model.bq
    wk0, bk0 = model.wk, model.bk
    queue0 = jnp.copy(model.queue)     # copy: original buffer is donated later
    m, T = model.m, model.T

    logits, labels = model.forward(im_q, im_k)
    logits = jax.block_until_ready(logits)
    labels = jax.block_until_ready(labels)

    # ------------------------- pure-JAX reference -------------------------
    # (mirrors the bf16-at-the-MXU precision choice of the kernels)
    xq = im_q.reshape(N, -1)
    xk = im_k.reshape(N, -1)
    wk_ref = wk0 * m + wq0 * (1.0 - m)
    bk_ref = bk0 * m + bq0 * (1.0 - m)
    q_ref = jnp.dot(xq.astype(jnp.bfloat16), wq0.astype(jnp.bfloat16),
                    preferred_element_type=jnp.float32) + bq0
    k_ref = jnp.dot(xk.astype(jnp.bfloat16), wk_ref.astype(jnp.bfloat16),
                    preferred_element_type=jnp.float32) + bk_ref
    qn_ref = q_ref / jnp.maximum(jnp.linalg.norm(q_ref, axis=1, keepdims=True), 1e-12)
    kn_ref = k_ref / jnp.maximum(jnp.linalg.norm(k_ref, axis=1, keepdims=True), 1e-12)
    l_pos_ref = jnp.sum(qn_ref * kn_ref, axis=1, keepdims=True) / T
    l_neg_ref = (qn_ref.astype(jnp.bfloat16).astype(jnp.float32)
                 @ queue0.astype(jnp.float32).T) / T
    logits_ref = jnp.concatenate([l_pos_ref, l_neg_ref], axis=1)

    assert logits.shape == (N, K_QUEUE + 1) and labels.shape == (N,)
    assert labels.dtype == jnp.int32 and bool(jnp.all(labels == 0))
    assert jnp.allclose(logits, logits_ref, atol=2e-2), (
        float(jnp.max(jnp.abs(logits - logits_ref))))

    # momentum-updated key weight matches the f32 reference
    assert jnp.allclose(model.wk, wk_ref, atol=1e-6)
    assert jnp.allclose(model.bk, bk_ref, atol=1e-6)

    # queue was updated in the first N rows, untouched elsewhere
    new_rows = model.queue[:N].astype(jnp.float32)
    assert jnp.allclose(new_rows, kn_ref, atol=2e-2)
    assert bool(jnp.array_equal(model.queue[N:], queue0[N:]))
    assert model.queue_ptr == N

    print("KERNEL_OK")
</pallas_src>

<mosaic_0001>
module attributes {stable_mosaic.version = 11 : i64} {
  func.func @_fused_encoder_kernel(%arg0: i32, %arg1: memref<8x512xf32, #tpu.memory_space<vmem>>, %arg2: memref<8x512xf32, #tpu.memory_space<vmem>>, %arg3: memref<512x128xf32, #tpu.memory_space<vmem>>, %arg4: memref<512x128xf32, #tpu.memory_space<vmem>>, %arg5: memref<1x128xf32, #tpu.memory_space<vmem>>, %arg6: memref<1x128xf32, #tpu.memory_space<vmem>>, %arg7: memref<8x128xf32, #tpu.memory_space<vmem>>, %arg8: memref<8x128xf32, #tpu.memory_space<vmem>>, %arg9: memref<512x128xf32, #tpu.memory_space<vmem>>, %arg10: memref<8x1xf32, #tpu.memory_space<vmem>>) attributes {dimension_semantics = [#tpu.dimension_semantics<arbitrary>], iteration_bounds = array<i64: 2>, scalar_prefetch = 0 : i64, scratch_operands = 0 : i64, tpu.core_type = #tpu.core_type<tc>, window_params = [{transform_indices = @transform_0, window_bounds = array<i64: 8, 512>}, {transform_indices = @transform_1, window_bounds = array<i64: 8, 512>}, {transform_indices = @transform_2, window_bounds = array<i64: 512, 128>}, {transform_indices = @transform_3, window_bounds = array<i64: 512, 128>}, {pipeline_mode = #tpu.pipeline_mode<synchronous>, transform_indices = @transform_4, window_bounds = array<i64: 1, 128>}, {pipeline_mode = #tpu.pipeline_mode<synchronous>, transform_indices = @transform_5, window_bounds = array<i64: 1, 128>}, {pipeline_mode = #tpu.pipeline_mode<synchronous>, transform_indices = @transform_6, window_bounds = array<i64: 8, 128>}, {pipeline_mode = #tpu.pipeline_mode<synchronous>, transform_indices = @transform_7, window_bounds = array<i64: 8, 128>}, {transform_indices = @transform_8, window_bounds = array<i64: 512, 128>}, {pipeline_mode = #tpu.pipeline_mode<synchronous>, transform_indices = @transform_9, window_bounds = array<i64: 8, 1>}]} {
    %c0_i32 = arith.constant 0 : i32
    %0 = arith.cmpi eq, %arg0, %c0_i32 : i32
    %1 = arith.extui %0 : i1 to i32
    %c0_i32_0 = arith.constant 0 : i32
    %2 = arith.cmpi ne, %1, %c0_i32_0 : i32
    scf.if %2 {
      %cst_22 = arith.constant 0.000000e+00 : f32
      %28 = vector.broadcast %cst_22 : f32 to vector<8x128xf32>
      %c0_23 = arith.constant 0 : index
      %c0_24 = arith.constant 0 : index
      %29 = vector.load %arg7[%c0_23, %c0_24] : memref<8x128xf32, #tpu.memory_space<vmem>>, vector<8x128xf32>
      tpu.vector_store %arg7[%c0_23, %c0_24], %28 {strides = array<i32>} : memref<8x128xf32, #tpu.memory_space<vmem>>, vector<8x128xf32>,
      %cst_25 = arith.constant 0.000000e+00 : f32
      %30 = vector.broadcast %cst_25 : f32 to vector<8x128xf32>
      %c0_26 = arith.constant 0 : index
      %c0_27 = arith.constant 0 : index
      %31 = vector.load %arg8[%c0_26, %c0_27] : memref<8x128xf32, #tpu.memory_space<vmem>>, vector<8x128xf32>
      tpu.vector_store %arg8[%c0_26, %c0_27], %30 {strides = array<i32>} : memref<8x128xf32, #tpu.memory_space<vmem>>, vector<8x128xf32>,
    } else {
    }
    %c0 = arith.constant 0 : index
    %c0_1 = arith.constant 0 : index
    %3 = vector.load %arg3[%c0, %c0_1] : memref<512x128xf32, #tpu.memory_space<vmem>>, vector<512x128xf32>
    %c0_2 = arith.constant 0 : index
    %c0_3 = arith.constant 0 : index
    %4 = vector.load %arg4[%c0_2, %c0_3] : memref<512x128xf32, #tpu.memory_space<vmem>>, vector<512x128xf32>
    %cst = arith.constant 9.990000e-01 : f32
    %5 = vector.broadcast %cst : f32 to vector<512x128xf32>
    %6 = arith.mulf %4, %5 : vector<512x128xf32>
    %cst_4 = arith.constant 1.000000e-03 : f32
    %7 = vector.broadcast %cst_4 : f32 to vector<512x128xf32>
    %8 = arith.mulf %3, %7 : vector<512x128xf32>
    %9 = arith.addf %6, %8 : vector<512x128xf32>
    %c0_5 = arith.constant 0 : index
    %c0_6 = arith.constant 0 : index
    %10 = vector.load %arg9[%c0_5, %c0_6] : memref<512x128xf32, #tpu.memory_space<vmem>>, vector<512x128xf32>
    tpu.vector_store %arg9[%c0_5, %c0_6], %9 {strides = array<i32>} : memref<512x128xf32, #tpu.memory_space<vmem>>, vector<512x128xf32>,
    %c0_7 = arith.constant 0 : index
    %c0_8 = arith.constant 0 : index
    %11 = vector.load %arg7[%c0_7, %c0_8] : memref<8x128xf32, #tpu.memory_space<vmem>>, vector<8x128xf32>
    %c0_9 = arith.constant 0 : index
    %c0_10 = arith.constant 0 : index
    %12 = vector.load %arg1[%c0_9, %c0_10] : memref<8x512xf32, #tpu.memory_space<vmem>>, vector<8x512xf32>
    %13 = arith.truncf %12 : vector<8x512xf32> to vector<8x512xbf16>
    %14 = arith.truncf %3 : vector<512x128xf32> to vector<512x128xbf16>
    %cst_11 = arith.constant dense<0.000000e+00> : vector<8x128xf32>
    %15 = tpu.matmul %13, %14, %cst_11 {dimension_numbers = #tpu.dot_dimension_numbers<[1], [0], [0], [1], [0, 0, 1, 1], [], []>} : vector<8x512xbf16>, vector<512x128xbf16>, vector<8x128xf32> -> vector<8x128xf32>
    %16 = arith.addf %11, %15 : vector<8x128xf32>
    %c0_12 = arith.constant 0 : index
    %c0_13 = arith.constant 0 : index
    %17 = vector.load %arg7[%c0_12, %c0_13] : memref<8x128xf32, #tpu.memory_space<vmem>>, vector<8x128xf32>
    tpu.vector_store %arg7[%c0_12, %c0_13], %16 {strides = array<i32>} : memref<8x128xf32, #tpu.memory_space<vmem>>, vector<8x128xf32>,
    %c0_14 = arith.constant 0 : index
    %c0_15 = arith.constant 0 : index
    %18 = vector.load %arg8[%c0_14, %c0_15] : memref<8x128xf32, #tpu.memory_space<vmem>>, vector<8x128xf32>
    %c0_16 = arith.constant 0 : index
    %c0_17 = arith.constant 0 : index
    %19 = vector.load %arg2[%c0_16, %c0_17] : memref<8x512xf32, #tpu.memory_space<vmem>>, vector<8x512xf32>
    %20 = arith.truncf %19 : vector<8x512xf32> to vector<8x512xbf16>
    %21 = arith.truncf %9 : vector<512x128xf32> to vector<512x128xbf16>
    %cst_18 = arith.constant dense<0.000000e+00> : vector<8x128xf32>
    %22 = tpu.matmul %20, %21, %cst_18 {dimension_numbers = #tpu.dot_dimension_numbers<[1], [0], [0], [1], [0, 0, 1, 1], [], []>} : vector<8x512xbf16>, vector<512x128xbf16>, vector<8x128xf32> -> vector<8x128xf32>
    %23 = arith.addf %18, %22 : vector<8x128xf32>
    %c0_19 = arith.constant 0 : index
    %c0_20 = arith.constant 0 : index
    %24 = vector.load %arg8[%c0_19, %c0_20] : memref<8x128xf32, #tpu.memory_space<vmem>>, vector<8x128xf32>
    tpu.vector_store %arg8[%c0_19, %c0_20], %23 {strides = array<i32>} : memref<8x128xf32, #tpu.memory_space<vmem>>, vector<8x128xf32>,
    %c1_i32 = arith.constant 1 : i32
    %25 = arith.cmpi eq, %arg0, %c1_i32 : i32
    %26 = arith.extui %25 : i1 to i32
    %c0_i32_21 = arith.constant 0 : i32
    %27 = arith.cmpi ne, %26, %c0_i32_21 : i32
    scf.if %27 {
      %c0_22 = arith.constant 0 : index
      %c0_23 = arith.constant 0 : index
      %28 = vector.load %arg7[%c0_22, %c0_23] : memref<8x128xf32, #tpu.memory_space<vmem>>, vector<8x128xf32>
      %c0_24 = arith.constant 0 : index
      %c0_25 = arith.constant 0 : index
      %29 = vector.load %arg5[%c0_24, %c0_25] : memref<1x128xf32, #tpu.memory_space<vmem>>, vector<1x128xf32>
      %30 = vector.broadcast %29 : vector<1x128xf32> to vector<8x128xf32>
      %31 = arith.addf %28, %30 : vector<8x128xf32>
      %c0_26 = arith.constant 0 : index
      %c0_27 = arith.constant 0 : index
      %32 = vector.load %arg8[%c0_26, %c0_27] : memref<8x128xf32, #tpu.memory_space<vmem>>, vector<8x128xf32>
      %c0_28 = arith.constant 0 : index
      %c0_29 = arith.constant 0 : index
      %33 = vector.load %arg6[%c0_28, %c0_29] : memref<1x128xf32, #tpu.memory_space<vmem>>, vector<1x128xf32>
      %34 = vector.broadcast %33 : vector<1x128xf32> to vector<8x128xf32>
      %35 = arith.addf %32, %34 : vector<8x128xf32>
      %36 = arith.mulf %31, %31 : vector<8x128xf32>
      %cst_30 = arith.constant dense<0.000000e+00> : vector<8xf32>
      %37 = vector.multi_reduction <add>, %36, %cst_30 [1] : vector<8x128xf32> to vector<8xf32>
      %38 = vector.shape_cast %37 : vector<8xf32> to vector<8x1xf32>
      %cst_31 = arith.constant 1.000000e-24 : f32
      %39 = vector.broadcast %cst_31 : f32 to vector<8x1xf32>
      %40 = arith.maximumf %38, %39 : vector<8x1xf32>
      %41 = math.rsqrt %40 : vector<8x1xf32>
      %42 = vector.broadcast %41 : vector<8x1xf32> to vector<8x128xf32>
      %43 = arith.mulf %31, %42 : vector<8x128xf32>
      %44 = arith.mulf %35, %35 : vector<8x128xf32>
      %cst_32 = arith.constant dense<0.000000e+00> : vector<8xf32>
      %45 = vector.multi_reduction <add>, %44, %cst_32 [1] : vector<8x128xf32> to vector<8xf32>
      %46 = vector.shape_cast %45 : vector<8xf32> to vector<8x1xf32>
      %cst_33 = arith.constant 1.000000e-24 : f32
      %47 = vector.broadcast %cst_33 : f32 to vector<8x1xf32>
      %48 = arith.maximumf %46, %47 : vector<8x1xf32>
      %49 = math.rsqrt %48 : vector<8x1xf32>
      %50 = vector.broadcast %49 : vector<8x1xf32> to vector<8x128xf32>
      %51 = arith.mulf %35, %50 : vector<8x128xf32>
      %c0_34 = arith.constant 0 : index
      %c0_35 = arith.constant 0 : index
      %52 = vector.load %arg7[%c0_34, %c0_35] : memref<8x128xf32, #tpu.memory_space<vmem>>, vector<8x128xf32>
      tpu.vector_store %arg7[%c0_34, %c0_35], %43 {strides = array<i32>} : memref<8x128xf32, #tpu.memory_space<vmem>>, vector<8x128xf32>,
      %c0_36 = arith.constant 0 : index
      %c0_37 = arith.constant 0 : index
      %53 = vector.load %arg8[%c0_36, %c0_37] : memref<8x128xf32, #tpu.memory_space<vmem>>, vector<8x128xf32>
      tpu.vector_store %arg8[%c0_36, %c0_37], %51 {strides = array<i32>} : memref<8x128xf32, #tpu.memory_space<vmem>>, vector<8x128xf32>,
      %54 = arith.mulf %43, %51 : vector<8x128xf32>
      %cst_38 = arith.constant dense<0.000000e+00> : vector<8xf32>
      %55 = vector.multi_reduction <add>, %54, %cst_38 [1] : vector<8x128xf32> to vector<8xf32>
      %56 = vector.shape_cast %55 : vector<8xf32> to vector<8x1xf32>
      %cst_39 = arith.constant 14.2857141 : f32
      %57 = vector.broadcast %cst_39 : f32 to vector<8x1xf32>
      %58 = arith.mulf %56, %57 : vector<8x1xf32>
      %c0_40 = arith.constant 0 : index
      %c0_41 = arith.constant 0 : index
      %59 = vector.load %arg10[%c0_40, %c0_41] : memref<8x1xf32, #tpu.memory_space<vmem>>, vector<8x1xf32>
      tpu.vector_store %arg10[%c0_40, %c0_41], %58 {strides = array<i32>} : memref<8x1xf32, #tpu.memory_space<vmem>>, vector<8x1xf32>,
    } else {
    }
    return
  }
  func.func @transform_0(%arg0: i32) -> (i32, i32) {
    %c0_i32 = arith.constant 0 : i32
    %c0_i32_0 = arith.constant 0 : i32
    return %c0_i32, %arg0 : i32, i32
  }
  func.func @transform_1(%arg0: i32) -> (i32, i32) {
    %c0_i32 = arith.constant 0 : i32
    %c0_i32_0 = arith.constant 0 : i32
    return %c0_i32, %arg0 : i32, i32
  }
  func.func @transform_2(%arg0: i32) -> (i32, i32) {
    %c0_i32 = arith.constant 0 : i32
    %c0_i32_0 = arith.constant 0 : i32
    return %arg0, %c0_i32 : i32, i32
  }
  func.func @transform_3(%arg0: i32) -> (i32, i32) {
    %c0_i32 = arith.constant 0 : i32
    %c0_i32_0 = arith.constant 0 : i32
    return %arg0, %c0_i32 : i32, i32
  }
  func.func @transform_4(%arg0: i32) -> (i32, i32) {
    %c0_i32 = arith.constant 0 : i32
    %c0_i32_0 = arith.constant 0 : i32
    %c0_i32_1 = arith.constant 0 : i32
    return %c0_i32, %c0_i32_0 : i32, i32
  }
  func.func @transform_5(%arg0: i32) -> (i32, i32) {
    %c0_i32 = arith.constant 0 : i32
    %c0_i32_0 = arith.constant 0 : i32
    %c0_i32_1 = arith.constant 0 : i32
    return %c0_i32, %c0_i32_0 : i32, i32
  }
  func.func @transform_6(%arg0: i32) -> (i32, i32) {
    %c0_i32 = arith.constant 0 : i32
    %c0_i32_0 = arith.constant 0 : i32
    %c0_i32_1 = arith.constant 0 : i32
    return %c0_i32, %c0_i32_0 : i32, i32
  }
  func.func @transform_7(%arg0: i32) -> (i32, i32) {
    %c0_i32 = arith.constant 0 : i32
    %c0_i32_0 = arith.constant 0 : i32
    %c0_i32_1 = arith.constant 0 : i32
    return %c0_i32, %c0_i32_0 : i32, i32
  }
  func.func @transform_8(%arg0: i32) -> (i32, i32) {
    %c0_i32 = arith.constant 0 : i32
    %c0_i32_0 = arith.constant 0 : i32
    return %arg0, %c0_i32 : i32, i32
  }
  func.func @transform_9(%arg0: i32) -> (i32, i32) {
    %c0_i32 = arith.constant 0 : i32
    %c0_i32_0 = arith.constant 0 : i32
    %c0_i32_1 = arith.constant 0 : i32
    return %c0_i32, %c0_i32_0 : i32, i32
  }
}

</mosaic_0001>

<llo_original>
// kernel: tpu_custom_call.1
$region0: #{tpu_custom_call.1}
  #allocation0 [shape = 'u32[]', space=smem, size = 0x4, offset = 0x4, fixed_abs, tag = 'smem constant byte address 0x4 - core index']
  #allocation1 [shape = 'u32[144,128]{1,0:T(1,128)}', space=vmem, size = 0x12000, scoped, tag = 'internal scratch']
  %s0 = inlined_call_operand.hbm [shape: f32[8,1024], index: 0, kind: input, shape index: {}]
  %s1 = inlined_call_operand.hbm [shape: f32[8,1024], index: 1, kind: input, shape index: {}]
  %s2 = inlined_call_operand.hbm [shape: f32[1024,128], index: 2, kind: input, shape index: {}]
  %s3 = inlined_call_operand.hbm [shape: f32[1024,128], index: 3, kind: input, shape index: {}]
  %s4 = inlined_call_operand.vmem [shape: f32[1,128], index: 4, kind: input, shape index: {}]
  %s5 = inlined_call_operand.vmem [shape: f32[1,128], index: 5, kind: input, shape index: {}]
  %s6 = inlined_call_operand.hbm [shape: f32[8,128], index: 6, kind: output, shape index: {0}]
  %s7 = inlined_call_operand.hbm [shape: f32[8,128], index: 7, kind: output, shape index: {1}]
  %s8 = inlined_call_operand.hbm [shape: f32[1024,128], index: 8, kind: output, shape index: {2}]
  %s9 = inlined_call_operand.vmem [shape: f32[8,1], index: 9, kind: output, shape index: {3}]
  %10 = xla_tuple %s6, %s7, %s8, %s9
  %s11 = sld [smem:[#allocation0]]
  $region105: #{tpu_custom_call.1} parent=0
    _
  %s13 = ssub.s32 1, %s11
  %s14 = scalar_select 0, %s13, %s11
  $region1: #{tpu_custom_call.1} parent=0
    #allocation2 [shape = 'u8[32768]{0}', space=vmem, size = 0x8000, scoped, tag = 'input window, operand 0']
    #allocation3 [shape = 's32[2]{0}', space=sflag, size = 0x8, scoped, tag = 'scoped memory for tpu_custom_call.1']
    #allocation4 [shape = 's32[2]{0}', space=sflag, size = 0x8, scoped, tag = 'scoped memory for tpu_custom_call.1']
    #allocation5 [shape = 'u8[32768]{0}', space=vmem, size = 0x8000, scoped, tag = 'input window, operand 1']
    #allocation6 [shape = 's32[2]{0}', space=sflag, size = 0x8, scoped, tag = 'scoped memory for tpu_custom_call.1']
    #allocation7 [shape = 'u8[524288]{0}', space=vmem, size = 0x80000, scoped, tag = 'input window, operand 2']
    #allocation8 [shape = 'u8[524288]{0}', space=vmem, size = 0x80000, scoped, tag = 'input window, operand 3']
    #allocation9 [shape = 's32[2]{0}', space=sflag, size = 0x8, scoped, tag = 'scoped memory for tpu_custom_call.1']
    #allocation10 [shape = 'u8[4096]{0}', space=vmem, size = 0x1000, scoped, tag = 'output window, operand 0, single buffered']
    #allocation11 [shape = 'u8[4096]{0}', space=vmem, size = 0x1000, scoped, tag = 'output window, operand 1, single buffered']
    #allocation12 [shape = 's32[1]{0}', space=sflag, size = 0x4, scoped, tag = 'scoped memory for tpu_custom_call.1']
    #allocation13 [shape = 'u8[524288]{0}', space=vmem, size = 0x80000, scoped, tag = 'output window, operand 2']
    %15 = vsyncpa [#allocation3], 0
    %s16 = scalar_lea.sflag [#allocation3], 1
    %17 = vsyncpa %s16, 0
    %18 = vsyncpa [#allocation6], 0
    %s19 = scalar_lea.sflag [#allocation6], 1
    %20 = vsyncpa %s19, 0
    %21 = vsyncpa [#allocation9], 0
    %s22 = scalar_lea.sflag [#allocation9], 1
    %23 = vsyncpa %s22, 0
    %24 = vsyncpa [#allocation4], 0
    %25 = vsyncpa [#allocation12], 0
    loop: start=0, step=1, limit=4
    $region2: #{tpu_custom_call.1} parent=1 // loop_pre_header
      _
    $region3: #{tpu_custom_call.1} parent=1 // loop_header
      %s27 = sphi 0, %s31
      %p28 = scmp.ge.s32.totalorder %s27, 4
      %s37 = sphi 0, %s39
      %s40 = sphi 0, %s37
      %s41 = sphi 0, %s40
      %s57 = sphi 0, %s41
      %s63 = sphi 0, %s65
      %s66 = sphi 0, %s63
      %s67 = sphi 0, %s66
      %s83 = sphi 0, %s67
      %s89 = sphi 0, %s91
      %s92 = sphi 0, %s89
      %s93 = sphi 0, %s92
      %s109 = sphi 0, %s93
      %s115 = sphi 0, %s117
      %s118 = sphi 0, %s115
      %s119 = sphi 0, %s118
      %s135 = sphi 0, %s119
      %s139 = sphi 0, %s139
      %s141 = sphi 0, %s139
      %s142 = sphi 0, %s141
      %s156 = sphi 0, %s142
      %s160 = sphi 0, %s160
      %s162 = sphi 0, %s160
      %s163 = sphi 0, %s162
      %s177 = sphi 0, %s163
      %s181 = sphi 0, %s181
      %s183 = sphi 0, %s181
      %s184 = sphi 0, %s183
      %s198 = sphi 0, %s184
      %s202 = sphi 0, %s202
      %s204 = sphi 0, %s202
      %s205 = sphi 0, %s204
      %s219 = sphi 0, %s205
      %s225 = sphi 0, %s227
      %s228 = sphi 0, %s225
      %s229 = sphi 0, %s228
      %s245 = sphi 0, %s229
      %s249 = sphi 0, %s249
      %s251 = sphi 0, %s249
      %s252 = sphi 0, %s251
      %s266 = sphi 0, %s252
    $region4: #{tpu_custom_call.1} parent=1 // loop_header_branch
      %30 = sbr.rel (%p28) target = $region8
    $region5: #{tpu_custom_call.1} parent=1 // loop_body
      %s32 = ssub.s32 %s27, 1
      %s33 = ssub.s32 %s27, 2
      %s34 = sadd.s32 %s27, 1
      %s35 = ssub.s32 %s27, %s34
      %p36 = scmp.eq.s32.totalorder %s35, 0
      %s38 = sadd.s32 %s37, 1
      %s39 = scalar_select %p36, %s37, %s38
      %p42 = pneg %p36
      %p43 = scmp.eq.s32.totalorder %s27, 1
      %p44 = por %p42, %p43
      %p45 = scmp.ne.s32.totalorder %s37, %s40
      %p46 = scmp.eq.s32.totalorder %s27, 0
      %p47 = por %p45, %p46
      %p48 = scmp.ne.s32.totalorder %s37, %s40
      %p49 = scmp.eq.s32.totalorder %s32, 1
      %p50 = por %p48, %p49
      %p51 = scmp.ne.s32.totalorder %s40, %s41
      %p52 = scmp.eq.s32.totalorder %s32, 0
      %p53 = por %p51, %p52
      %p54 = scmp.ne.s32.totalorder %s40, %s41
      %p55 = scmp.eq.s32.totalorder %s33, 1
      %p56 = por %p54, %p55
      %p58 = scmp.ne.s32.totalorder %s41, %s57
      %p59 = scmp.eq.s32.totalorder %s33, 0
      %p60 = por %p58, %p59
      %s61 = ssub.s32 %s27, %s34
      %p62 = scmp.eq.s32.totalorder %s61, 0
      %s64 = sadd.s32 %s63, 1
      %s65 = scalar_select %p62, %s63, %s64
      %p68 = pneg %p62
      %p69 = scmp.eq.s32.totalorder %s27, 1
      %p70 = por %p68, %p69
      %p71 = scmp.ne.s32.totalorder %s63, %s66
      %p72 = scmp.eq.s32.totalorder %s27, 0
      %p73 = por %p71, %p72
      %p74 = scmp.ne.s32.totalorder %s63, %s66
      %p75 = scmp.eq.s32.totalorder %s32, 1
      %p76 = por %p74, %p75
      %p77 = scmp.ne.s32.totalorder %s66, %s67
      %p78 = scmp.eq.s32.totalorder %s32, 0
      %p79 = por %p77, %p78
      %p80 = scmp.ne.s32.totalorder %s66, %s67
      %p81 = scmp.eq.s32.totalorder %s33, 1
      %p82 = por %p80, %p81
      %p84 = scmp.ne.s32.totalorder %s67, %s83
      %p85 = scmp.eq.s32.totalorder %s33, 0
      %p86 = por %p84, %p85
      %s87 = ssub.s32 %s27, %s34
      %p88 = scmp.eq.s32.totalorder %s87, 0
      %s90 = sadd.s32 %s89, 1
      %s91 = scalar_select %p88, %s89, %s90
      %p94 = pneg %p88
      %p95 = scmp.eq.s32.totalorder %s27, 1
      %p96 = por %p94, %p95
      %p97 = scmp.ne.s32.totalorder %s89, %s92
      %p98 = scmp.eq.s32.totalorder %s27, 0
      %p99 = por %p97, %p98
      %p100 = scmp.ne.s32.totalorder %s89, %s92
      %p101 = scmp.eq.s32.totalorder %s32, 1
      %p102 = por %p100, %p101
      %p103 = scmp.ne.s32.totalorder %s92, %s93
      %p104 = scmp.eq.s32.totalorder %s32, 0
      %p105 = por %p103, %p104
      %p106 = scmp.ne.s32.totalorder %s92, %s93
      %p107 = scmp.eq.s32.totalorder %s33, 1
      %p108 = por %p106, %p107
      %p110 = scmp.ne.s32.totalorder %s93, %s109
      %p111 = scmp.eq.s32.totalorder %s33, 0
      %p112 = por %p110, %p111
      %s113 = ssub.s32 %s27, %s34
      %p114 = scmp.eq.s32.totalorder %s113, 0
      %s116 = sadd.s32 %s115, 1
      %s117 = scalar_select %p114, %s115, %s116
      %p120 = pneg %p114
      %p121 = scmp.eq.s32.totalorder %s27, 1
      %p122 = por %p120, %p121
      %p123 = scmp.ne.s32.totalorder %s115, %s118
      %p124 = scmp.eq.s32.totalorder %s27, 0
      %p125 = por %p123, %p124
      %p126 = scmp.ne.s32.totalorder %s115, %s118
      %p127 = scmp.eq.s32.totalorder %s32, 1
      %p128 = por %p126, %p127
      %p129 = scmp.ne.s32.totalorder %s118, %s119
      %p130 = scmp.eq.s32.totalorder %s32, 0
      %p131 = por %p129, %p130
      %p132 = scmp.ne.s32.totalorder %s118, %s119
      %p133 = scmp.eq.s32.totalorder %s33, 1
      %p134 = por %p132, %p133
      %p136 = scmp.ne.s32.totalorder %s119, %s135
      %p137 = scmp.eq.s32.totalorder %s33, 0
      %p138 = por %p136, %p137
      %s140 = sadd.s32 %s139, 1
      %p143 = scmp.eq.s32.totalorder %s27, 1
      %p144 = scmp.ne.s32.totalorder %s139, %s141
      %p145 = scmp.eq.s32.totalorder %s27, 0
      %p146 = por %p144, %p145
      %p147 = scmp.ne.s32.totalorder %s139, %s141
      %p148 = scmp.eq.s32.totalorder %s32, 1
      %p149 = por %p147, %p148
      %p150 = scmp.ne.s32.totalorder %s141, %s142
      %p151 = scmp.eq.s32.totalorder %s32, 0
      %p152 = por %p150, %p151
      %p153 = scmp.ne.s32.totalorder %s141, %s142
      %p154 = scmp.eq.s32.totalorder %s33, 1
      %p155 = por %p153, %p154
      %p157 = scmp.ne.s32.totalorder %s142, %s156
      %p158 = scmp.eq.s32.totalorder %s33, 0
      %p159 = por %p157, %p158
      %s161 = sadd.s32 %s160, 1
      %p164 = scmp.eq.s32.totalorder %s27, 1
      %p165 = scmp.ne.s32.totalorder %s160, %s162
      %p166 = scmp.eq.s32.totalorder %s27, 0
      %p167 = por %p165, %p166
      %p168 = scmp.ne.s32.totalorder %s160, %s162
      %p169 = scmp.eq.s32.totalorder %s32, 1
      %p170 = por %p168, %p169
      %p171 = scmp.ne.s32.totalorder %s162, %s163
      %p172 = scmp.eq.s32.totalorder %s32, 0
      %p173 = por %p171, %p172
      %p174 = scmp.ne.s32.totalorder %s162, %s163
      %p175 = scmp.eq.s32.totalorder %s33, 1
      %p176 = por %p174, %p175
      %p178 = scmp.ne.s32.totalorder %s163, %s177
      %p179 = scmp.eq.s32.totalorder %s33, 0
      %p180 = por %p178, %p179
      %s182 = sadd.s32 %s181, 1
      %p185 = scmp.eq.s32.totalorder %s27, 1
      %p186 = scmp.ne.s32.totalorder %s181, %s183
      %p187 = scmp.eq.s32.totalorder %s27, 0
      %p188 = por %p186, %p187
      %p189 = scmp.ne.s32.totalorder %s181, %s183
      %p190 = scmp.eq.s32.totalorder %s32, 1
      %p191 = por %p189, %p190
      %p192 = scmp.ne.s32.totalorder %s183, %s184
      %p193 = scmp.eq.s32.totalorder %s32, 0
      %p194 = por %p192, %p193
      %p195 = scmp.ne.s32.totalorder %s183, %s184
      %p196 = scmp.eq.s32.totalorder %s33, 1
      %p197 = por %p195, %p196
      %p199 = scmp.ne.s32.totalorder %s184, %s198
      %p200 = scmp.eq.s32.totalorder %s33, 0
      %p201 = por %p199, %p200
      %s203 = sadd.s32 %s202, 1
      %p206 = scmp.eq.s32.totalorder %s27, 1
      %p207 = scmp.ne.s32.totalorder %s202, %s204
      %p208 = scmp.eq.s32.totalorder %s27, 0
      %p209 = por %p207, %p208
      %p210 = scmp.ne.s32.totalorder %s202, %s204
      %p211 = scmp.eq.s32.totalorder %s32, 1
      %p212 = por %p210, %p211
      %p213 = scmp.ne.s32.totalorder %s204, %s205
      %p214 = scmp.eq.s32.totalorder %s32, 0
      %p215 = por %p213, %p214
      %p216 = scmp.ne.s32.totalorder %s204, %s205
      %p217 = scmp.eq.s32.totalorder %s33, 1
      %p218 = por %p216, %p217
      %p220 = scmp.ne.s32.totalorder %s205, %s219
      %p221 = scmp.eq.s32.totalorder %s33, 0
      %p222 = por %p220, %p221
      %s223 = ssub.s32 %s27, %s34
      %p224 = scmp.eq.s32.totalorder %s223, 0
      %s226 = sadd.s32 %s225, 1
      %s227 = scalar_select %p224, %s225, %s226
      %p230 = pneg %p224
      %p231 = scmp.eq.s32.totalorder %s27, 1
      %p232 = por %p230, %p231
      %p233 = scmp.ne.s32.totalorder %s225, %s228
      %p234 = scmp.eq.s32.totalorder %s27, 0
      %p235 = por %p233, %p234
      %p236 = scmp.ne.s32.totalorder %s225, %s228
      %p237 = scmp.eq.s32.totalorder %s32, 1
      %p238 = por %p236, %p237
      %p239 = scmp.ne.s32.totalorder %s228, %s229
      %p240 = scmp.eq.s32.totalorder %s32, 0
      %p241 = por %p239, %p240
      %p242 = scmp.ne.s32.totalorder %s228, %s229
      %p243 = scmp.eq.s32.totalorder %s33, 1
      %p244 = por %p242, %p243
      %p246 = scmp.ne.s32.totalorder %s229, %s245
      %p247 = scmp.eq.s32.totalorder %s33, 0
      %p248 = por %p246, %p247
      %s250 = sadd.s32 %s249, 1
      %p253 = scmp.eq.s32.totalorder %s27, 1
      %p254 = scmp.ne.s32.totalorder %s249, %s251
      %p255 = scmp.eq.s32.totalorder %s27, 0
      %p256 = por %p254, %p255
      %p257 = scmp.ne.s32.totalorder %s249, %s251
      %p258 = scmp.eq.s32.totalorder %s32, 1
      %p259 = por %p257, %p258
      %p260 = scmp.ne.s32.totalorder %s251, %s252
      %p261 = scmp.eq.s32.totalorder %s32, 0
      %p262 = por %p260, %p261
      %p263 = scmp.ne.s32.totalorder %s251, %s252
      %p264 = scmp.eq.s32.totalorder %s33, 1
      %p265 = por %p263, %p264
      %p267 = scmp.ne.s32.totalorder %s252, %s266
      %p268 = scmp.eq.s32.totalorder %s33, 0
      %p269 = por %p267, %p268
      %p270 = scmp.le.s32.totalorder 1, %s27
      %p271 = scmp.lt.s32.totalorder %s27, 3
      %p272 = pnand %p270, %p271
      %p273 = pneg %p272
      // Predicated region
      $region9: #{tpu_custom_call.1} parent=5 // pred_check
        _
      $region10: #{tpu_custom_call.1} parent=5 // pred_check_branch
        %275 = sbr.rel (%p272) target = $region12
      $region11: #{tpu_custom_call.1} parent=5 // pred_region
        %s276 = ssub.s32 %s27, 1
        // Predicated region
        $region13: #{tpu_custom_call.1} parent=11 // pred_check
          %p277 = pneg %p152
        $region14: #{tpu_custom_call.1} parent=11 // pred_check_branch
          %279 = sbr.rel (%p277) target = $region16
        $region15: #{tpu_custom_call.1} parent=11 // pred_region
          _
        $region16: #{tpu_custom_call.1} parent=11 // pred_fallthru
          _
        // Predicated region
        $region17: #{tpu_custom_call.1} parent=11 // pred_check
          %p280 = pneg %p173
        $region18: #{tpu_custom_call.1} parent=11 // pred_check_branch
          %282 = sbr.rel (%p280) target = $region20
        $region19: #{tpu_custom_call.1} parent=11 // pred_region
          _
        $region20: #{tpu_custom_call.1} parent=11 // pred_fallthru
          _
      $region12: #{tpu_custom_call.1} parent=5 // pred_fallthru
        _
      %p283 = scmp.lt.s32.totalorder %s27, 2
      // Predicated region
      $region21: #{tpu_custom_call.1} parent=5 // pred_check
        %p284 = pneg %p283
      $region22: #{tpu_custom_call.1} parent=5 // pred_check_branch
        %286 = sbr.rel (%p284) target = $region24
      $region23: #{tpu_custom_call.1} parent=5 // pred_region
        // Predicated region
        $region25: #{tpu_custom_call.1} parent=23 // pred_check
          %p287 = pneg %p47
        $region26: #{tpu_custom_call.1} parent=23 // pred_check_branch
          %289 = sbr.rel (%p287) target = $region28
        $region27: #{tpu_custom_call.1} parent=23 // pred_region
          %s290 = sand.u32 %s37, 1
          %s291 = scalar_lea.sflag [#allocation3], %s290
          %s292 = sand.u32 %s37, 1
          %s293 = smul.addr %s292, 32
          %s294 = scalar_lea.vmem [#allocation2], %s293
          %s295 = smul.u32 4, %s27
          %s297 = ssub.s32 512, 512
          %298 = vsyncadd %s291, %s297
          %s299 = smul.addr %s295, 128
          %s300 = scalar_lea.hbm %s0, %s299
          %s302 = sshll.u32 %s294, 4
          %s303 = int_to_ptr.vmem [resolvable:$true] %s302
          %305 = dma.hbm_to_vmem [thread:$0]  %s300, 512, %s303, %s291
        $region28: #{tpu_custom_call.1} parent=23 // pred_fallthru
          _
        // Predicated region
        $region29: #{tpu_custom_call.1} parent=23 // pred_check
          %p306 = pneg %p73
        $region30: #{tpu_custom_call.1} parent=23 // pred_check_branch
          %308 = sbr.rel (%p306) target = $region32
        $region31: #{tpu_custom_call.1} parent=23 // pred_region
          %s309 = sand.u32 %s27, 1
          %s310 = scalar_lea.sflag [#allocation6], %s309
          %s311 = sand.u32 %s63, 1
          %s312 = smul.addr %s311, 32
          %s313 = scalar_lea.vmem [#allocation5], %s312
          %s314 = smul.u32 4, %s27
          %s316 = ssub.s32 512, 512
          %317 = vsyncadd %s310, %s316
          %s318 = smul.addr %s314, 128
          %s319 = scalar_lea.hbm %s1, %s318
          %s321 = sshll.u32 %s313, 4
          %s322 = int_to_ptr.vmem [resolvable:$true] %s321
          %324 = dma.hbm_to_vmem [thread:$0]  %s319, 512, %s322, %s310
        $region32: #{tpu_custom_call.1} parent=23 // pred_fallthru
          _
        // Predicated region
        $region33: #{tpu_custom_call.1} parent=23 // pred_check
          %p325 = pneg %p99
        $region34: #{tpu_custom_call.1} parent=23 // pred_check_branch
          %327 = sbr.rel (%p325) target = $region36
        $region35: #{tpu_custom_call.1} parent=23 // pred_region
          %s328 = sand.u32 %s27, 1
          %s329 = scalar_lea.sflag [#allocation6], %s328
          %s330 = sand.u32 %s89, 1
          %s331 = smul.addr %s330, 512
          %s332 = scalar_lea.vmem [#allocation7], %s331
          %s333 = smul.u32 64, %s27
          %s335 = ssub.s32 8192, 8192
          %336 = vsyncadd %s329, %s335
          %s337 = smul.addr %s333, 128
          %s338 = scalar_lea.hbm %s2, %s337
          %s339 = sshll.u32 %s332, 4
          %s340 = int_to_ptr.vmem [resolvable:$true] %s339
          %345 = dma.hbm_to_vmem [thread:$0]  %s338, 8192, %s340, %s329, 128, 128, 8
        $region36: #{tpu_custom_call.1} parent=23 // pred_fallthru
          _
        // Predicated region
        $region37: #{tpu_custom_call.1} parent=23 // pred_check
          %p346 = pneg %p125
        $region38: #{tpu_custom_call.1} parent=23 // pred_check_branch
          %348 = sbr.rel (%p346) target = $region40
        $region39: #{tpu_custom_call.1} parent=23 // pred_region
          %s349 = sand.u32 %s115, 1
          %s350 = scalar_lea.sflag [#allocation9], %s349
          %s351 = sand.u32 %s115, 1
          %s352 = smul.addr %s351, 512
          %s353 = scalar_lea.vmem [#allocation8], %s352
          %s354 = smul.u32 64, %s27
          %s356 = ssub.s32 8192, 8192
          %357 = vsyncadd %s350, %s356
          %s358 = smul.addr %s354, 128
          %s359 = scalar_lea.hbm %s3, %s358
          %s360 = sshll.u32 %s353, 4
          %s361 = int_to_ptr.vmem [resolvable:$true] %s360
          %366 = dma.hbm_to_vmem [thread:$0]  %s359, 8192, %s361, %s350, 128, 128, 8
        $region40: #{tpu_custom_call.1} parent=23 // pred_fallthru
          _
      $region24: #{tpu_custom_call.1} parent=5 // pred_fallthru
        _
      %p367 = scmp.le.s32.totalorder 1, %s27
      %p368 = scmp.lt.s32.totalorder %s27, 3
      %p369 = pnand %p367, %p368
      %p370 = pneg %p369
      // Predicated region
      $region41: #{tpu_custom_call.1} parent=5 // pred_check
        _
      $region42: #{tpu_custom_call.1} parent=5 // pred_check_branch
        %372 = sbr.rel (%p369) target = $region44
      $region43: #{tpu_custom_call.1} parent=5 // pred_region
        %s373 = ssub.s32 %s27, 1
        %s374 = sand.u32 %s40, 1
        %s375 = scalar_lea.sflag [#allocation3], %s374
        %s376 = sand.u32 %s40, 1
        %s377 = smul.addr %s376, 32
        %s378 = scalar_lea.vmem [#allocation2], %s377
        // Predicated region
        $region45: #{tpu_custom_call.1} parent=43 // pred_check
          %p379 = pneg %p53
        $region46: #{tpu_custom_call.1} parent=43 // pred_check_branch
          %381 = sbr.rel (%p379) target = $region48
        $region47: #{tpu_custom_call.1} parent=43 // pred_region
          %382 = dma.done %s375, 512
        $region48: #{tpu_custom_call.1} parent=43 // pred_fallthru
          _
        %s383 = sand.u32 %s32, 1
        %s384 = scalar_lea.sflag [#allocation6], %s383
        %s385 = sand.u32 %s66, 1
        %s386 = smul.addr %s385, 32
        %s387 = scalar_lea.vmem [#allocation5], %s386
        // Predicated region
        $region49: #{tpu_custom_call.1} parent=43 // pred_check
          %p388 = pneg %p79
        $region50: #{tpu_custom_call.1} parent=43 // pred_check_branch
          %390 = sbr.rel (%p388) target = $region52
        $region51: #{tpu_custom_call.1} parent=43 // pred_region
          %391 = dma.done %s384, 512
        $region52: #{tpu_custom_call.1} parent=43 // pred_fallthru
          _
        %s392 = sand.u32 %s32, 1
        %s393 = scalar_lea.sflag [#allocation6], %s392
        %s394 = sand.u32 %s92, 1
        %s395 = smul.addr %s394, 512
        %s396 = scalar_lea.vmem [#allocation7], %s395
        // Predicated region
        $region53: #{tpu_custom_call.1} parent=43 // pred_check
          %p397 = pneg %p105
        $region54: #{tpu_custom_call.1} parent=43 // pred_check_branch
          %399 = sbr.rel (%p397) target = $region56
        $region55: #{tpu_custom_call.1} parent=43 // pred_region
          %400 = dma.done %s393, 8192
        $region56: #{tpu_custom_call.1} parent=43 // pred_fallthru
          _
        %s401 = sand.u32 %s118, 1
        %s402 = scalar_lea.sflag [#allocation9], %s401
        %s403 = sand.u32 %s118, 1
        %s404 = smul.addr %s403, 512
        %s405 = scalar_lea.vmem [#allocation8], %s404
        // Predicated region
        $region57: #{tpu_custom_call.1} parent=43 // pred_check
          %p406 = pneg %p131
        $region58: #{tpu_custom_call.1} parent=43 // pred_check_branch
          %408 = sbr.rel (%p406) target = $region60
        $region59: #{tpu_custom_call.1} parent=43 // pred_region
          %409 = dma.done %s402, 8192
        $region60: #{tpu_custom_call.1} parent=43 // pred_fallthru
          _
        %s410 = sand.u32 %s40, 1
        %s411 = scalar_lea.sflag [#allocation3], %s410
        %s412 = sand.u32 %s40, 1
        %s413 = smul.addr %s412, 32
        %s414 = scalar_lea.vmem [#allocation2], %s413
        %p415 = pneg %p53
        %p416 = pneg %p50
        %s417 = sand.u32 %s32, 1
        %s418 = scalar_lea.sflag [#allocation6], %s417
        %s419 = sand.u32 %s66, 1
        %s420 = smul.addr %s419, 32
        %s421 = scalar_lea.vmem [#allocation5], %s420
        %p422 = pneg %p79
        %p423 = pneg %p76
        %s424 = sand.u32 %s32, 1
        %s425 = scalar_lea.sflag [#allocation6], %s424
        %s426 = sand.u32 %s92, 1
        %s427 = smul.addr %s426, 512
        %s428 = scalar_lea.vmem [#allocation7], %s427
        %p429 = pneg %p105
        %p430 = pneg %p102
        %s431 = sand.u32 %s118, 1
        %s432 = scalar_lea.sflag [#allocation9], %s431
        %s433 = sand.u32 %s118, 1
        %s434 = smul.addr %s433, 512
        %s435 = scalar_lea.vmem [#allocation8], %s434
        %p436 = pneg %p131
        %p437 = pneg %p128
        %p438 = pneg %p152
        %p439 = pneg %p149
        %p440 = pneg %p173
        %p441 = pneg %p170
        %p442 = pneg %p194
        %p443 = pneg %p191
        %p444 = pneg %p215
        %p445 = pneg %p212
        %p446 = pneg %p241
        %p447 = pneg %p238
        %s448 = sand.u32 %s32, 1
        %s449 = scalar_lea.sflag [#allocation4], %s448
        %s450 = sand.u32 %s228, 1
        %s451 = smul.addr %s450, 512
        %s452 = scalar_lea.vmem [#allocation13], %s451
        %p453 = pneg %p262
        %p454 = pneg %p259
        %s455 = smul.u32 4, %s32
        %s456 = smul.u32 4, %s32
        %s457 = smul.u32 64, %s32
        %s458 = smul.u32 64, %s32
        %s459 = smul.u32 64, %s32
        %p461 = scmp.eq.s32.totalorder %s32, 0
        // Predicated region
        $region61: #{tpu_custom_call.1} parent=43 // pred_check
          %p462 = pneg %p461
        $region62: #{tpu_custom_call.1} parent=43 // pred_check_branch
          %464 = sbr.rel (%p462) target = $region64
        $region63: #{tpu_custom_call.1} parent=43 // pred_region
          %465 = vst [vmem:[#allocation10] sm:$0xff] 0.0
          %466 = vst [vmem:[#allocation11] sm:$0xff] 0.0
        $region64: #{tpu_custom_call.1} parent=43 // pred_fallthru
          _
        %v467 = vld [vmem:[%s396] sm:$0xff]
        %v468 = vld [vmem:[%s396 + $0x8] sm:$0xff]
        %v469 = vld [vmem:[%s396 + $0x10] sm:$0xff]
        %v470 = vld [vmem:[%s396 + $0x18] sm:$0xff]
        %v471 = vld [vmem:[%s396 + $0x20] sm:$0xff]
        %v472 = vld [vmem:[%s396 + $0x28] sm:$0xff]
        %v473 = vld [vmem:[%s396 + $0x30] sm:$0xff]
        %v474 = vld [vmem:[%s396 + $0x38] sm:$0xff]
        %v475 = vld [vmem:[%s396 + $0x40] sm:$0xff]
        %v476 = vld [vmem:[%s396 + $0x48] sm:$0xff]
        %v477 = vld [vmem:[%s396 + $0x50] sm:$0xff]
        %v478 = vld [vmem:[%s396 + $0x58] sm:$0xff]
        %v479 = vld [vmem:[%s396 + $0x60] sm:$0xff]
        %v480 = vld [vmem:[%s396 + $0x68] sm:$0xff]
        %v481 = vld [vmem:[%s396 + $0x70] sm:$0xff]
        %v482 = vld [vmem:[%s396 + $0x78] sm:$0xff]
        %v483 = vld [vmem:[%s396 + $0x80] sm:$0xff]
        %v484 = vld [vmem:[%s396 + $0x88] sm:$0xff]
        %v485 = vld [vmem:[%s396 + $0x90] sm:$0xff]
        %v486 = vld [vmem:[%s396 + $0x98] sm:$0xff]
        %v487 = vld [vmem:[%s396 + $0xa0] sm:$0xff]
        %v488 = vld [vmem:[%s396 + $0xa8] sm:$0xff]
        %v489 = vld [vmem:[%s396 + $0xb0] sm:$0xff]
        %v490 = vld [vmem:[%s396 + $0xb8] sm:$0xff]
        %v491 = vld [vmem:[%s396 + $0xc0] sm:$0xff]
        %v492 = vld [vmem:[%s396 + $0xc8] sm:$0xff]
        %v493 = vld [vmem:[%s396 + $0xd0] sm:$0xff]
        %v494 = vld [vmem:[%s396 + $0xd8] sm:$0xff]
        %v495 = vld [vmem:[%s396 + $0xe0] sm:$0xff]
        %v496 = vld [vmem:[%s396 + $0xe8] sm:$0xff]
        %v497 = vld [vmem:[%s396 + $0xf0] sm:$0xff]
        %v498 = vld [vmem:[%s396 + $0xf8] sm:$0xff]
        %v499 = vld [vmem:[%s396 + $0x100] sm:$0xff]
        %v500 = vld [vmem:[%s396 + $0x108] sm:$0xff]
        %v501 = vld [vmem:[%s396 + $0x110] sm:$0xff]
        %v502 = vld [vmem:[%s396 + $0x118] sm:$0xff]
        %v503 = vld [vmem:[%s396 + $0x120] sm:$0xff]
        %v504 = vld [vmem:[%s396 + $0x128] sm:$0xff]
        %v505 = vld [vmem:[%s396 + $0x130] sm:$0xff]
        %v506 = vld [vmem:[%s396 + $0x138] sm:$0xff]
        %v507 = vld [vmem:[%s396 + $0x140] sm:$0xff]
        %v508 = vld [vmem:[%s396 + $0x148] sm:$0xff]
        %v509 = vld [vmem:[%s396 + $0x150] sm:$0xff]
        %v510 = vld [vmem:[%s396 + $0x158] sm:$0xff]
        %v511 = vld [vmem:[%s396 + $0x160] sm:$0xff]
        %v512 = vld [vmem:[%s396 + $0x168] sm:$0xff]
        %v513 = vld [vmem:[%s396 + $0x170] sm:$0xff]
        %v514 = vld [vmem:[%s396 + $0x178] sm:$0xff]
        %v515 = vld [vmem:[%s396 + $0x180] sm:$0xff]
        %v516 = vld [vmem:[%s396 + $0x188] sm:$0xff]
        %v517 = vld [vmem:[%s396 + $0x190] sm:$0xff]
        %v518 = vld [vmem:[%s396 + $0x198] sm:$0xff]
        %v519 = vld [vmem:[%s396 + $0x1a0] sm:$0xff]
        %v520 = vld [vmem:[%s396 + $0x1a8] sm:$0xff]
        %v521 = vld [vmem:[%s396 + $0x1b0] sm:$0xff]
        %v522 = vld [vmem:[%s396 + $0x1b8] sm:$0xff]
        %v523 = vld [vmem:[%s396 + $0x1c0] sm:$0xff]
        %v524 = vld [vmem:[%s396 + $0x1c8] sm:$0xff]
        %v525 = vld [vmem:[%s396 + $0x1d0] sm:$0xff]
        %v526 = vld [vmem:[%s396 + $0x1d8] sm:$0xff]
        %v527 = vld [vmem:[%s396 + $0x1e0] sm:$0xff]
        %v528 = vld [vmem:[%s396 + $0x1e8] sm:$0xff]
        %v529 = vld [vmem:[%s396 + $0x1f0] sm:$0xff]
        %v530 = vld [vmem:[%s396 + $0x1f8] sm:$0xff]
        %v531 = vld [vmem:[%s405] sm:$0xff]
        %v532 = vld [vmem:[%s405 + $0x8] sm:$0xff]
        %v533 = vld [vmem:[%s405 + $0x10] sm:$0xff]
        %v534 = vld [vmem:[%s405 + $0x18] sm:$0xff]
        %v535 = vld [vmem:[%s405 + $0x20] sm:$0xff]
        %v536 = vld [vmem:[%s405 + $0x28] sm:$0xff]
        %v537 = vld [vmem:[%s405 + $0x30] sm:$0xff]
        %v538 = vld [vmem:[%s405 + $0x38] sm:$0xff]
        %v539 = vld [vmem:[%s405 + $0x40] sm:$0xff]
        %v540 = vld [vmem:[%s405 + $0x48] sm:$0xff]
        %v541 = vld [vmem:[%s405 + $0x50] sm:$0xff]
        %v542 = vld [vmem:[%s405 + $0x58] sm:$0xff]
        %v543 = vld [vmem:[%s405 + $0x60] sm:$0xff]
        %v544 = vld [vmem:[%s405 + $0x68] sm:$0xff]
        %v545 = vld [vmem:[%s405 + $0x70] sm:$0xff]
        %v546 = vld [vmem:[%s405 + $0x78] sm:$0xff]
        %v547 = vld [vmem:[%s405 + $0x80] sm:$0xff]
        %v548 = vld [vmem:[%s405 + $0x88] sm:$0xff]
        %v549 = vld [vmem:[%s405 + $0x90] sm:$0xff]
        %v550 = vld [vmem:[%s405 + $0x98] sm:$0xff]
        %v551 = vld [vmem:[%s405 + $0xa0] sm:$0xff]
        %v552 = vld [vmem:[%s405 + $0xa8] sm:$0xff]
        %v553 = vld [vmem:[%s405 + $0xb0] sm:$0xff]
        %v554 = vld [vmem:[%s405 + $0xb8] sm:$0xff]
        %v555 = vld [vmem:[%s405 + $0xc0] sm:$0xff]
        %v556 = vld [vmem:[%s405 + $0xc8] sm:$0xff]
        %v557 = vld [vmem:[%s405 + $0xd0] sm:$0xff]
        %v558 = vld [vmem:[%s405 + $0xd8] sm:$0xff]
        %v559 = vld [vmem:[%s405 + $0xe0] sm:$0xff]
        %v560 = vld [vmem:[%s405 + $0xe8] sm:$0xff]
        %v561 = vld [vmem:[%s405 + $0xf0] sm:$0xff]
        %v562 = vld [vmem:[%s405 + $0xf8] sm:$0xff]
        %v563 = vld [vmem:[%s405 + $0x100] sm:$0xff]
        %v564 = vld [vmem:[%s405 + $0x108] sm:$0xff]
        %v565 = vld [vmem:[%s405 + $0x110] sm:$0xff]
        %v566 = vld [vmem:[%s405 + $0x118] sm:$0xff]
        %v567 = vld [vmem:[%s405 + $0x120] sm:$0xff]
        %v568 = vld [vmem:[%s405 + $0x128] sm:$0xff]
        %v569 = vld [vmem:[%s405 + $0x130] sm:$0xff]
        %v570 = vld [vmem:[%s405 + $0x138] sm:$0xff]
        %v571 = vld [vmem:[%s405 + $0x140] sm:$0xff]
        %v572 = vld [vmem:[%s405 + $0x148] sm:$0xff]
        %v573 = vld [vmem:[%s405 + $0x150] sm:$0xff]
        %v574 = vld [vmem:[%s405 + $0x158] sm:$0xff]
        %v575 = vld [vmem:[%s405 + $0x160] sm:$0xff]
        %v576 = vld [vmem:[%s405 + $0x168] sm:$0xff]
        %v577 = vld [vmem:[%s405 + $0x170] sm:$0xff]
        %v578 = vld [vmem:[%s405 + $0x178] sm:$0xff]
        %v579 = vld [vmem:[%s405 + $0x180] sm:$0xff]
        %v580 = vld [vmem:[%s405 + $0x188] sm:$0xff]
        %v581 = vld [vmem:[%s405 + $0x190] sm:$0xff]
        %v582 = vld [vmem:[%s405 + $0x198] sm:$0xff]
        %v583 = vld [vmem:[%s405 + $0x1a0] sm:$0xff]
        %v584 = vld [vmem:[%s405 + $0x1a8] sm:$0xff]
        %v585 = vld [vmem:[%s405 + $0x1b0] sm:$0xff]
        %v586 = vld [vmem:[%s405 + $0x1b8] sm:$0xff]
        %v587 = vld [vmem:[%s405 + $0x1c0] sm:$0xff]
        %v588 = vld [vmem:[%s405 + $0x1c8] sm:$0xff]
        %v589 = vld [vmem:[%s405 + $0x1d0] sm:$0xff]
        %v590 = vld [vmem:[%s405 + $0x1d8] sm:$0xff]
        %v591 = vld [vmem:[%s405 + $0x1e0] sm:$0xff]
        %v592 = vld [vmem:[%s405 + $0x1e8] sm:$0xff]
        %v593 = vld [vmem:[%s405 + $0x1f0] sm:$0xff]
        %v594 = vld [vmem:[%s405 + $0x1f8] sm:$0xff]
        %v595 = vmul.f32 %v531, 0.999
        %v596 = vmul.f32 %v532, 0.999
        %v597 = vmul.f32 %v533, 0.999
        %v598 = vmul.f32 %v534, 0.999
        %v599 = vmul.f32 %v535, 0.999
        %v600 = vmul.f32 %v536, 0.999
        %v601 = vmul.f32 %v537, 0.999
        %v602 = vmul.f32 %v538, 0.999
        %v603 = vmul.f32 %v539, 0.999
        %v604 = vmul.f32 %v540, 0.999
        %v605 = vmul.f32 %v541, 0.999
        %v606 = vmul.f32 %v542, 0.999
        %v607 = vmul.f32 %v543, 0.999
        %v608 = vmul.f32 %v544, 0.999
        %v609 = vmul.f32 %v545, 0.999
        %v610 = vmul.f32 %v546, 0.999
        %v611 = vmul.f32 %v547, 0.999
        %v612 = vmul.f32 %v548, 0.999
        %v613 = vmul.f32 %v549, 0.999
        %v614 = vmul.f32 %v550, 0.999
        %v615 = vmul.f32 %v551, 0.999
        %v616 = vmul.f32 %v552, 0.999
        %v617 = vmul.f32 %v553, 0.999
        %v618 = vmul.f32 %v554, 0.999
        %v619 = vmul.f32 %v555, 0.999
        %v620 = vmul.f32 %v556, 0.999
        %v621 = vmul.f32 %v557, 0.999
        %v622 = vmul.f32 %v558, 0.999
        %v623 = vmul.f32 %v559, 0.999
        %v624 = vmul.f32 %v560, 0.999
        %v625 = vmul.f32 %v561, 0.999
        %v626 = vmul.f32 %v562, 0.999
        %v627 = vmul.f32 %v563, 0.999
        %v628 = vmul.f32 %v564, 0.999
        %v629 = vmul.f32 %v565, 0.999
        %v630 = vmul.f32 %v566, 0.999
        %v631 = vmul.f32 %v567, 0.999
        %v632 = vmul.f32 %v568, 0.999
        %v633 = vmul.f32 %v569, 0.999
        %v634 = vmul.f32 %v570, 0.999
        %v635 = vmul.f32 %v571, 0.999
        %v636 = vmul.f32 %v572, 0.999
        %v637 = vmul.f32 %v573, 0.999
        %v638 = vmul.f32 %v574, 0.999
        %v639 = vmul.f32 %v575, 0.999
        %v640 = vmul.f32 %v576, 0.999
        %v641 = vmul.f32 %v577, 0.999
        %v642 = vmul.f32 %v578, 0.999
        %v643 = vmul.f32 %v579, 0.999
        %v644 = vmul.f32 %v580, 0.999
        %v645 = vmul.f32 %v581, 0.999
        %v646 = vmul.f32 %v582, 0.999
        %v647 = vmul.f32 %v583, 0.999
        %v648 = vmul.f32 %v584, 0.999
        %v649 = vmul.f32 %v585, 0.999
        %v650 = vmul.f32 %v586, 0.999
        %v651 = vmul.f32 %v587, 0.999
        %v652 = vmul.f32 %v588, 0.999
        %v653 = vmul.f32 %v589, 0.999
        %v654 = vmul.f32 %v590, 0.999
        %v655 = vmul.f32 %v591, 0.999
        %v656 = vmul.f32 %v592, 0.999
        %v657 = vmul.f32 %v593, 0.999
        %v658 = vmul.f32 %v594, 0.999
        %v659 = vmul.f32 %v467, 0.001
        %v660 = vmul.f32 %v468, 0.001
        %v661 = vmul.f32 %v469, 0.001
        %v662 = vmul.f32 %v470, 0.001
        %v663 = vmul.f32 %v471, 0.001
        %v664 = vmul.f32 %v472, 0.001
        %v665 = vmul.f32 %v473, 0.001
        %v666 = vmul.f32 %v474, 0.001
        %v667 = vmul.f32 %v475, 0.001
        %v668 = vmul.f32 %v476, 0.001
        %v669 = vmul.f32 %v477, 0.001
        %v670 = vmul.f32 %v478, 0.001
        %v671 = vmul.f32 %v479, 0.001
        %v672 = vmul.f32 %v480, 0.001
        %v673 = vmul.f32 %v481, 0.001
        %v674 = vmul.f32 %v482, 0.001
        %v675 = vmul.f32 %v483, 0.001
        %v676 = vmul.f32 %v484, 0.001
        %v677 = vmul.f32 %v485, 0.001
        %v678 = vmul.f32 %v486, 0.001
        %v679 = vmul.f32 %v487, 0.001
        %v680 = vmul.f32 %v488, 0.001
        %v681 = vmul.f32 %v489, 0.001
        %v682 = vmul.f32 %v490, 0.001
        %v683 = vmul.f32 %v491, 0.001
        %v684 = vmul.f32 %v492, 0.001
        %v685 = vmul.f32 %v493, 0.001
        %v686 = vmul.f32 %v494, 0.001
        %v687 = vmul.f32 %v495, 0.001
        %v688 = vmul.f32 %v496, 0.001
        %v689 = vmul.f32 %v497, 0.001
        %v690 = vmul.f32 %v498, 0.001
        %v691 = vmul.f32 %v499, 0.001
        %v692 = vmul.f32 %v500, 0.001
        %v693 = vmul.f32 %v501, 0.001
        %v694 = vmul.f32 %v502, 0.001
        %v695 = vmul.f32 %v503, 0.001
        %v696 = vmul.f32 %v504, 0.001
        %v697 = vmul.f32 %v505, 0.001
        %v698 = vmul.f32 %v506, 0.001
        %v699 = vmul.f32 %v507, 0.001
        %v700 = vmul.f32 %v508, 0.001
        %v701 = vmul.f32 %v509, 0.001
        %v702 = vmul.f32 %v510, 0.001
        %v703 = vmul.f32 %v511, 0.001
        %v704 = vmul.f32 %v512, 0.001
        %v705 = vmul.f32 %v513, 0.001
        %v706 = vmul.f32 %v514, 0.001
        %v707 = vmul.f32 %v515, 0.001
        %v708 = vmul.f32 %v516, 0.001
        %v709 = vmul.f32 %v517, 0.001
        %v710 = vmul.f32 %v518, 0.001
        %v711 = vmul.f32 %v519, 0.001
        %v712 = vmul.f32 %v520, 0.001
        %v713 = vmul.f32 %v521, 0.001
        %v714 = vmul.f32 %v522, 0.001
        %v715 = vmul.f32 %v523, 0.001
        %v716 = vmul.f32 %v524, 0.001
        %v717 = vmul.f32 %v525, 0.001
        %v718 = vmul.f32 %v526, 0.001
        %v719 = vmul.f32 %v527, 0.001
        %v720 = vmul.f32 %v528, 0.001
        %v721 = vmul.f32 %v529, 0.001
        %v722 = vmul.f32 %v530, 0.001
        %v723 = vadd.f32 %v595, %v659
        %v724 = vadd.f32 %v596, %v660
        %v725 = vadd.f32 %v597, %v661
        %v726 = vadd.f32 %v598, %v662
        %v727 = vadd.f32 %v599, %v663
        %v728 = vadd.f32 %v600, %v664
        %v729 = vadd.f32 %v601, %v665
        %v730 = vadd.f32 %v602, %v666
        %v731 = vadd.f32 %v603, %v667
        %v732 = vadd.f32 %v604, %v668
        %v733 = vadd.f32 %v605, %v669
        %v734 = vadd.f32 %v606, %v670
        %v735 = vadd.f32 %v607, %v671
        %v736 = vadd.f32 %v608, %v672
        %v737 = vadd.f32 %v609, %v673
        %v738 = vadd.f32 %v610, %v674
        %v739 = vadd.f32 %v611, %v675
        %v740 = vadd.f32 %v612, %v676
        %v741 = vadd.f32 %v613, %v677
        %v742 = vadd.f32 %v614, %v678
        %v743 = vadd.f32 %v615, %v679
        %v744 = vadd.f32 %v616, %v680
        %v745 = vadd.f32 %v617, %v681
        %v746 = vadd.f32 %v618, %v682
        %v747 = vadd.f32 %v619, %v683
        %v748 = vadd.f32 %v620, %v684
        %v749 = vadd.f32 %v621, %v685
        %v750 = vadd.f32 %v622, %v686
        %v751 = vadd.f32 %v623, %v687
        %v752 = vadd.f32 %v624, %v688
        %v753 = vadd.f32 %v625, %v689
        %v754 = vadd.f32 %v626, %v690
        %v755 = vadd.f32 %v627, %v691
        %v756 = vadd.f32 %v628, %v692
        %v757 = vadd.f32 %v629, %v693
        %v758 = vadd.f32 %v630, %v694
        %v759 = vadd.f32 %v631, %v695
        %v760 = vadd.f32 %v632, %v696
        %v761 = vadd.f32 %v633, %v697
        %v762 = vadd.f32 %v634, %v698
        %v763 = vadd.f32 %v635, %v699
        %v764 = vadd.f32 %v636, %v700
        %v765 = vadd.f32 %v637, %v701
        %v766 = vadd.f32 %v638, %v702
        %v767 = vadd.f32 %v639, %v703
        %v768 = vadd.f32 %v640, %v704
        %v769 = vadd.f32 %v641, %v705
        %v770 = vadd.f32 %v642, %v706
        %v771 = vadd.f32 %v643, %v707
        %v772 = vadd.f32 %v644, %v708
        %v773 = vadd.f32 %v645, %v709
        %v774 = vadd.f32 %v646, %v710
        %v775 = vadd.f32 %v647, %v711
        %v776 = vadd.f32 %v648, %v712
        %v777 = vadd.f32 %v649, %v713
        %v778 = vadd.f32 %v650, %v714
        %v779 = vadd.f32 %v651, %v715
        %v780 = vadd.f32 %v652, %v716
        %v781 = vadd.f32 %v653, %v717
        %v782 = vadd.f32 %v654, %v718
        %v783 = vadd.f32 %v655, %v719
        %v784 = vadd.f32 %v656, %v720
        %v785 = vadd.f32 %v657, %v721
        %v786 = vadd.f32 %v658, %v722
        %787 = vst [vmem:[%s452] sm:$0xff] %v723
        %788 = vst [vmem:[%s452 + $0x8] sm:$0xff] %v724
        %789 = vst [vmem:[%s452 + $0x10] sm:$0xff] %v725
        %790 = vst [vmem:[%s452 + $0x18] sm:$0xff] %v726
        %791 = vst [vmem:[%s452 + $0x20] sm:$0xff] %v727
        %792 = vst [vmem:[%s452 + $0x28] sm:$0xff] %v728
        %793 = vst [vmem:[%s452 + $0x30] sm:$0xff] %v729
        %794 = vst [vmem:[%s452 + $0x38] sm:$0xff] %v730
        %795 = vst [vmem:[%s452 + $0x40] sm:$0xff] %v731
        %796 = vst [vmem:[%s452 + $0x48] sm:$0xff] %v732
        %797 = vst [vmem:[%s452 + $0x50] sm:$0xff] %v733
        %798 = vst [vmem:[%s452 + $0x58] sm:$0xff] %v734
        %799 = vst [vmem:[%s452 + $0x60] sm:$0xff] %v735
        %800 = vst [vmem:[%s452 + $0x68] sm:$0xff] %v736
        %801 = vst [vmem:[%s452 + $0x70] sm:$0xff] %v737
        %802 = vst [vmem:[%s452 + $0x78] sm:$0xff] %v738
        %803 = vst [vmem:[%s452 + $0x80] sm:$0xff] %v739
        %804 = vst [vmem:[%s452 + $0x88] sm:$0xff] %v740
        %805 = vst [vmem:[%s452 + $0x90] sm:$0xff] %v741
        %806 = vst [vmem:[%s452 + $0x98] sm:$0xff] %v742
        %807 = vst [vmem:[%s452 + $0xa0] sm:$0xff] %v743
        %808 = vst [vmem:[%s452 + $0xa8] sm:$0xff] %v744
        %809 = vst [vmem:[%s452 + $0xb0] sm:$0xff] %v745
        %810 = vst [vmem:[%s452 + $0xb8] sm:$0xff] %v746
        %811 = vst [vmem:[%s452 + $0xc0] sm:$0xff] %v747
        %812 = vst [vmem:[%s452 + $0xc8] sm:$0xff] %v748
        %813 = vst [vmem:[%s452 + $0xd0] sm:$0xff] %v749
        %814 = vst [vmem:[%s452 + $0xd8] sm:$0xff] %v750
        %815 = vst [vmem:[%s452 + $0xe0] sm:$0xff] %v751
        %816 = vst [vmem:[%s452 + $0xe8] sm:$0xff] %v752
        %817 = vst [vmem:[%s452 + $0xf0] sm:$0xff] %v753
        %818 = vst [vmem:[%s452 + $0xf8] sm:$0xff] %v754
        %819 = vst [vmem:[%s452 + $0x100] sm:$0xff] %v755
        %820 = vst [vmem:[%s452 + $0x108] sm:$0xff] %v756
        %821 = vst [vmem:[%s452 + $0x110] sm:$0xff] %v757
        %822 = vst [vmem:[%s452 + $0x118] sm:$0xff] %v758
        %823 = vst [vmem:[%s452 + $0x120] sm:$0xff] %v759
        %824 = vst [vmem:[%s452 + $0x128] sm:$0xff] %v760
        %825 = vst [vmem:[%s452 + $0x130] sm:$0xff] %v761
        %826 = vst [vmem:[%s452 + $0x138] sm:$0xff] %v762
        %827 = vst [vmem:[%s452 + $0x140] sm:$0xff] %v763
        %828 = vst [vmem:[%s452 + $0x148] sm:$0xff] %v764
        %829 = vst [vmem:[%s452 + $0x150] sm:$0xff] %v765
        %830 = vst [vmem:[%s452 + $0x158] sm:$0xff] %v766
        %831 = vst [vmem:[%s452 + $0x160] sm:$0xff] %v767
        %832 = vst [vmem:[%s452 + $0x168] sm:$0xff] %v768
        %833 = vst [vmem:[%s452 + $0x170] sm:$0xff] %v769
        %834 = vst [vmem:[%s452 + $0x178] sm:$0xff] %v770
        %835 = vst [vmem:[%s452 + $0x180] sm:$0xff] %v771
        %836 = vst [vmem:[%s452 + $0x188] sm:$0xff] %v772
        %837 = vst [vmem:[%s452 + $0x190] sm:$0xff] %v773
        %838 = vst [vmem:[%s452 + $0x198] sm:$0xff] %v774
        %839 = vst [vmem:[%s452 + $0x1a0] sm:$0xff] %v775
        %840 = vst [vmem:[%s452 + $0x1a8] sm:$0xff] %v776
        %841 = vst [vmem:[%s452 + $0x1b0] sm:$0xff] %v777
        %842 = vst [vmem:[%s452 + $0x1b8] sm:$0xff] %v778
        %843 = vst [vmem:[%s452 + $0x1c0] sm:$0xff] %v779
        %844 = vst [vmem:[%s452 + $0x1c8] sm:$0xff] %v780
        %845 = vst [vmem:[%s452 + $0x1d0] sm:$0xff] %v781
        %846 = vst [vmem:[%s452 + $0x1d8] sm:$0xff] %v782
        %847 = vst [vmem:[%s452 + $0x1e0] sm:$0xff] %v783
        %848 = vst [vmem:[%s452 + $0x1e8] sm:$0xff] %v784
        %849 = vst [vmem:[%s452 + $0x1f0] sm:$0xff] %v785
        %850 = vst [vmem:[%s452 + $0x1f8] sm:$0xff] %v786
        %v851 = vld [vmem:[#allocation10] sm:$0xff]
        %v852 = vld [vmem:[%s378] sm:$0xff]
        %v853 = vld [vmem:[%s378 + $0x8] sm:$0xff]
        %v854 = vld [vmem:[%s378 + $0x10] sm:$0xff]
        %v855 = vld [vmem:[%s378 + $0x18] sm:$0xff]
        %v856 = vpack.c.bf16 %v852, %v852
        %v857 = vpack.c.bf16 %v853, %v853
        %v858 = vpack.c.bf16 %v854, %v854
        %v859 = vpack.c.bf16 %v855, %v855
        %v860 = vpack.c.bf16 %v468, %v467
        %v861 = vpack.c.bf16 %v470, %v469
        %v862 = vpack.c.bf16 %v472, %v471
        %v863 = vpack.c.bf16 %v474, %v473
        %v864 = vpack.c.bf16 %v476, %v475
        %v865 = vpack.c.bf16 %v478, %v477
        %v866 = vpack.c.bf16 %v480, %v479
        %v867 = vpack.c.bf16 %v482, %v481
        %v868 = vpack.c.bf16 %v484, %v483
        %v869 = vpack.c.bf16 %v486, %v485
        %v870 = vpack.c.bf16 %v488, %v487
        %v871 = vpack.c.bf16 %v490, %v489
        %v872 = vpack.c.bf16 %v492, %v491
        %v873 = vpack.c.bf16 %v494, %v493
        %v874 = vpack.c.bf16 %v496, %v495
        %v875 = vpack.c.bf16 %v498, %v497
        %v876 = vpack.c.bf16 %v500, %v499
        %v877 = vpack.c.bf16 %v502, %v501
        %v878 = vpack.c.bf16 %v504, %v503
        %v879 = vpack.c.bf16 %v506, %v505
        %v880 = vpack.c.bf16 %v508, %v507
        %v881 = vpack.c.bf16 %v510, %v509
        %v882 = vpack.c.bf16 %v512, %v511
        %v883 = vpack.c.bf16 %v514, %v513
        %v884 = vpack.c.bf16 %v516, %v515
        %v885 = vpack.c.bf16 %v518, %v517
        %v886 = vpack.c.bf16 %v520, %v519
        %v887 = vpack.c.bf16 %v522, %v521
        %v888 = vpack.c.bf16 %v524, %v523
        %v889 = vpack.c.bf16 %v526, %v525
        %v890 = vpack.c.bf16 %v528, %v527
        %v891 = vpack.c.bf16 %v530, %v529
        %892 = vmatprep.subr.bf16.mxu0 0
        %893 = vmatpush1.bf16.msra.mxu0 %v860
        %894 = vmatprep.subr.bf16.mxu0 0
        %895 = vmatpush1.bf16.msra.mxu0 %v861
        %896 = vmatprep.subr.bf16.mxu0 0
        %897 = vmatpush1.bf16.msra.mxu0 %v862
        %898 = vmatprep.subr.bf16.mxu0 0
        %899 = vmatpush1.bf16.msra.mxu0 %v863
        %900 = vmatprep.subr.bf16.mxu0 0
        %901 = vmatpush1.bf16.msra.mxu0 %v864
        %902 = vmatprep.subr.bf16.mxu0 0
        %903 = vmatpush1.bf16.msra.mxu0 %v865
        %904 = vmatprep.subr.bf16.mxu0 0
        %905 = vmatpush1.bf16.msra.mxu0 %v866
        %906 = vmatprep.subr.bf16.mxu0 0
        %907 = vmatpush1.bf16.msra.mxu0 %v867
        %908 = vmatprep.subr.bf16.mxu0 0
        %909 = vmatpush1.bf16.msra.mxu0 %v868
        %910 = vmatprep.subr.bf16.mxu0 0
        %911 = vmatpush1.bf16.msra.mxu0 %v869
        %912 = vmatprep.subr.bf16.mxu0 0
        %913 = vmatpush1.bf16.msra.mxu0 %v870
        %914 = vmatprep.subr.bf16.mxu0 0
        %915 = vmatpush1.bf16.msra.mxu0 %v871
        %916 = vmatprep.subr.bf16.mxu0 0
        %917 = vmatpush1.bf16.msra.mxu0 %v872
        %918 = vmatprep.subr.bf16.mxu0 0
        %919 = vmatpush1.bf16.msra.mxu0 %v873
        %920 = vmatprep.subr.bf16.mxu0 0
        %921 = vmatpush1.bf16.msra.mxu0 %v874
        %922 = vmatprep.subr.bf16.mxu0 0
        %923 = vmatpush1.bf16.msra.mxu0 %v875
        %924 = vmatprep.mubr.bf16.mxu0 %v857
        %925 = vmatmul.mubr.bf16.gmra.mrb[0].mxu0 %v856
        %v926 = vpop.f32.mrb[0].mxu0
        %v927 = vadd.f32 0.0, %v926
        %v928 = vpop.f32.mrb[0].mxu0
        %v929 = vpop.f32.mrb[0].mxu0
        %v930 = vpop.f32.mrb[0].mxu0
        %931 = vdwg.mxu0
        %932 = vmatprep.subr.bf16.mxu0 0
        %933 = vmatpush1.bf16.msra.mxu0 %v876
        %934 = vmatprep.subr.bf16.mxu0 0
        %935 = vmatpush1.bf16.msra.mxu0 %v877
        %936 = vmatprep.subr.bf16.mxu0 0
        %937 = vmatpush1.bf16.msra.mxu0 %v878
        %938 = vmatprep.subr.bf16.mxu0 0
        %939 = vmatpush1.bf16.msra.mxu0 %v879
        %940 = vmatprep.subr.bf16.mxu0 0
        %941 = vmatpush1.bf16.msra.mxu0 %v880
        %942 = vmatprep.subr.bf16.mxu0 0
        %943 = vmatpush1.bf16.msra.mxu0 %v881
        %944 = vmatprep.subr.bf16.mxu0 0
        %945 = vmatpush1.bf16.msra.mxu0 %v882
        %946 = vmatprep.subr.bf16.mxu0 0
        %947 = vmatpush1.bf16.msra.mxu0 %v883
        %948 = vmatprep.subr.bf16.mxu0 0
        %949 = vmatpush1.bf16.msra.mxu0 %v884
        %950 = vmatprep.subr.bf16.mxu0 0
        %951 = vmatpush1.bf16.msra.mxu0 %v885
        %952 = vmatprep.subr.bf16.mxu0 0
        %953 = vmatpush1.bf16.msra.mxu0 %v886
        %954 = vmatprep.subr.bf16.mxu0 0
        %955 = vmatpush1.bf16.msra.mxu0 %v887
        %956 = vmatprep.subr.bf16.mxu0 0
        %957 = vmatpush1.bf16.msra.mxu0 %v888
        %958 = vmatprep.subr.bf16.mxu0 0
        %959 = vmatpush1.bf16.msra.mxu0 %v889
        %960 = vmatprep.subr.bf16.mxu0 0
        %961 = vmatpush1.bf16.msra.mxu0 %v890
        %962 = vmatprep.subr.bf16.mxu0 0
        %963 = vmatpush1.bf16.msra.mxu0 %v891
        %964 = vmatprep.mubr.bf16.mxu0 %v859
        %965 = vmatmul.mubr.bf16.gmra.mrb[0].mxu0 %v858
        %v966 = vpop.f32.mrb[0].mxu0
        %v967 = vadd.f32 %v927, %v966
        %v968 = vpop.f32.mrb[0].mxu0
        %v969 = vpop.f32.mrb[0].mxu0
        %v970 = vpop.f32.mrb[0].mxu0
        %971 = vdwg.mxu0
        %v972 = vadd.f32 %v851, %v967
        %973 = vst [vmem:[#allocation10] sm:$0xff] %v972
        %v974 = vld [vmem:[#allocation11] sm:$0xff]
        %v975 = vld [vmem:[%s387] sm:$0xff]
        %v976 = vld [vmem:[%s387 + $0x8] sm:$0xff]
        %v977 = vld [vmem:[%s387 + $0x10] sm:$0xff]
        %v978 = vld [vmem:[%s387 + $0x18] sm:$0xff]
        %v979 = vpack.c.bf16 %v975, %v975
        %v980 = vpack.c.bf16 %v976, %v976
        %v981 = vpack.c.bf16 %v977, %v977
        %v982 = vpack.c.bf16 %v978, %v978
        %v983 = vpack.c.bf16 %v724, %v723
        %v984 = vpack.c.bf16 %v726, %v725
        %v985 = vpack.c.bf16 %v728, %v727
        %v986 = vpack.c.bf16 %v730, %v729
        %v987 = vpack.c.bf16 %v732, %v731
        %v988 = vpack.c.bf16 %v734, %v733
        %v989 = vpack.c.bf16 %v736, %v735
        %v990 = vpack.c.bf16 %v738, %v737
        %v991 = vpack.c.bf16 %v740, %v739
        %v992 = vpack.c.bf16 %v742, %v741
        %v993 = vpack.c.bf16 %v744, %v743
        %v994 = vpack.c.bf16 %v746, %v745
        %v995 = vpack.c.bf16 %v748, %v747
        %v996 = vpack.c.bf16 %v750, %v749
        %v997 = vpack.c.bf16 %v752, %v751
        %v998 = vpack.c.bf16 %v754, %v753
        %v999 = vpack.c.bf16 %v756, %v755
        %v1000 = vpack.c.bf16 %v758, %v757
        %v1001 = vpack.c.bf16 %v760, %v759
        %v1002 = vpack.c.bf16 %v762, %v761
        %v1003 = vpack.c.bf16 %v764, %v763
        %v1004 = vpack.c.bf16 %v766, %v765
        %v1005 = vpack.c.bf16 %v768, %v767
        %v1006 = vpack.c.bf16 %v770, %v769
        %v1007 = vpack.c.bf16 %v772, %v771
        %v1008 = vpack.c.bf16 %v774, %v773
        %v1009 = vpack.c.bf16 %v776, %v775
        %v1010 = vpack.c.bf16 %v778, %v777
        %v1011 = vpack.c.bf16 %v780, %v779
        %v1012 = vpack.c.bf16 %v782, %v781
        %v1013 = vpack.c.bf16 %v784, %v783
        %v1014 = vpack.c.bf16 %v786, %v785
        %1015 = vmatprep.subr.bf16.mxu0 0
        %1016 = vmatpush1.bf16.msra.mxu0 %v983
        %1017 = vmatprep.subr.bf16.mxu0 0
        %1018 = vmatpush1.bf16.msra.mxu0 %v984
        %1019 = vmatprep.subr.bf16.mxu0 0
        %1020 = vmatpush1.bf16.msra.mxu0 %v985
        %1021 = vmatprep.subr.bf16.mxu0 0
        %1022 = vmatpush1.bf16.msra.mxu0 %v986
        %1023 = vmatprep.subr.bf16.mxu0 0
        %1024 = vmatpush1.bf16.msra.mxu0 %v987
        %1025 = vmatprep.subr.bf16.mxu0 0
        %1026 = vmatpush1.bf16.msra.mxu0 %v988
        %1027 = vmatprep.subr.bf16.mxu0 0
        %1028 = vmatpush1.bf16.msra.mxu0 %v989
        %1029 = vmatprep.subr.bf16.mxu0 0
        %1030 = vmatpush1.bf16.msra.mxu0 %v990
        %1031 = vmatprep.subr.bf16.mxu0 0
        %1032 = vmatpush1.bf16.msra.mxu0 %v991
        %1033 = vmatprep.subr.bf16.mxu0 0
        %1034 = vmatpush1.bf16.msra.mxu0 %v992
        %1035 = vmatprep.subr.bf16.mxu0 0
        %1036 = vmatpush1.bf16.msra.mxu0 %v993
        %1037 = vmatprep.subr.bf16.mxu0 0
        %1038 = vmatpush1.bf16.msra.mxu0 %v994
        %1039 = vmatprep.subr.bf16.mxu0 0
        %1040 = vmatpush1.bf16.msra.mxu0 %v995
        %1041 = vmatprep.subr.bf16.mxu0 0
        %1042 = vmatpush1.bf16.msra.mxu0 %v996
        %1043 = vmatprep.subr.bf16.mxu0 0
        %1044 = vmatpush1.bf16.msra.mxu0 %v997
        %1045 = vmatprep.subr.bf16.mxu0 0
        %1046 = vmatpush1.bf16.msra.mxu0 %v998
        %1047 = vmatprep.mubr.bf16.mxu0 %v980
        %1048 = vmatmul.mubr.bf16.gmra.mrb[0].mxu0 %v979
        %v1049 = vpop.f32.mrb[0].mxu0
        %v1050 = vadd.f32 0.0, %v1049
        %v1051 = vpop.f32.mrb[0].mxu0
        %v1052 = vpop.f32.mrb[0].mxu0
        %v1053 = vpop.f32.mrb[0].mxu0
        %1054 = vdwg.mxu0
        %1055 = vmatprep.subr.bf16.mxu0 0
        %1056 = vmatpush1.bf16.msra.mxu0 %v999
        %1057 = vmatprep.subr.bf16.mxu0 0
        %1058 = vmatpush1.bf16.msra.mxu0 %v1000
        %1059 = vmatprep.subr.bf16.mxu0 0
        %1060 = vmatpush1.bf16.msra.mxu0 %v1001
        %1061 = vmatprep.subr.bf16.mxu0 0
        %1062 = vmatpush1.bf16.msra.mxu0 %v1002
        %1063 = vmatprep.subr.bf16.mxu0 0
        %1064 = vmatpush1.bf16.msra.mxu0 %v1003
        %1065 = vmatprep.subr.bf16.mxu0 0
        %1066 = vmatpush1.bf16.msra.mxu0 %v1004
        %1067 = vmatprep.subr.bf16.mxu0 0
        %1068 = vmatpush1.bf16.msra.mxu0 %v1005
        %1069 = vmatprep.subr.bf16.mxu0 0
        %1070 = vmatpush1.bf16.msra.mxu0 %v1006
        %1071 = vmatprep.subr.bf16.mxu0 0
        %1072 = vmatpush1.bf16.msra.mxu0 %v1007
        %1073 = vmatprep.subr.bf16.mxu0 0
        %1074 = vmatpush1.bf16.msra.mxu0 %v1008
        %1075 = vmatprep.subr.bf16.mxu0 0
        %1076 = vmatpush1.bf16.msra.mxu0 %v1009
        %1077 = vmatprep.subr.bf16.mxu0 0
        %1078 = vmatpush1.bf16.msra.mxu0 %v1010
        %1079 = vmatprep.subr.bf16.mxu0 0
        %1080 = vmatpush1.bf16.msra.mxu0 %v1011
        %1081 = vmatprep.subr.bf16.mxu0 0
        %1082 = vmatpush1.bf16.msra.mxu0 %v1012
        %1083 = vmatprep.subr.bf16.mxu0 0
        %1084 = vmatpush1.bf16.msra.mxu0 %v1013
        %1085 = vmatprep.subr.bf16.mxu0 0
        %1086 = vmatpush1.bf16.msra.mxu0 %v1014
        %1087 = vmatprep.mubr.bf16.mxu0 %v982
        %1088 = vmatmul.mubr.bf16.gmra.mrb[0].mxu0 %v981
        %v1089 = vpop.f32.mrb[0].mxu0
        %v1090 = vadd.f32 %v1050, %v1089
        %v1091 = vpop.f32.mrb[0].mxu0
        %v1092 = vpop.f32.mrb[0].mxu0
        %v1093 = vpop.f32.mrb[0].mxu0
        %1094 = vdwg.mxu0
        %v1095 = vadd.f32 %v974, %v1090
        %1096 = vst [vmem:[#allocation11] sm:$0xff] %v1095
        %p1097 = scmp.eq.s32.totalorder %s32, 1
        // Predicated region
        $region65: #{tpu_custom_call.1} parent=43 // pred_check
          %p1098 = pneg %p1097
        $region66: #{tpu_custom_call.1} parent=43 // pred_check_branch
          %1100 = sbr.rel (%p1098) target = $region68
        $region67: #{tpu_custom_call.1} parent=43 // pred_region
          %v1101 = vld [vmem:[#allocation10] sm:$0xff]
          %v1102 = vld [vmem:[%s4] sm:$0x1]
          %v1104 = vlaneseq
          %v1105 = vshrl.u32 %v1104, 7
          %v1106 = vsub.s32 0, %v1105
          %v1107 = vrot.slane %v1102, %v1106
          %v1109 = vadd.f32 %v1101, %v1107
          %v1110 = vld [vmem:[#allocation11] sm:$0xff]
          %v1111 = vld [vmem:[%s5] sm:$0x1]
          %v1113 = vlaneseq
          %v1114 = vshrl.u32 %v1113, 7
          %v1115 = vsub.s32 0, %v1114
          %v1116 = vrot.slane %v1111, %v1115
          %v1118 = vadd.f32 %v1110, %v1116
          %v1119 = vmul.f32 %v1109, %v1109
          %1120 = vadd.xlane.f32.xlu0 %v1119
          %v1121 = vpop.xlane.xlu0 %1120
          %v1122 = vmax.f32 %v1121, 1e-24
          %v1123 = vrsqrt.pop %v1122
          %v1124 = vmul.f32 %v1109, %v1123
          %v1125 = vmul.f32 %v1118, %v1118
          %1126 = vadd.xlane.f32.xlu0 %v1125
          %v1127 = vpop.xlane.xlu0 %1126
          %v1128 = vmax.f32 %v1127, 1e-24
          %v1129 = vrsqrt.pop %v1128
          %v1130 = vmul.f32 %v1118, %v1129
          %1131 = vst [vmem:[#allocation10] sm:$0xff] %v1124
          %1132 = vst [vmem:[#allocation11] sm:$0xff] %v1130
          %v1133 = vmul.f32 %v1124, %v1130
          %1134 = vadd.xlane.f32.xlu0 %v1133
          %v1135 = vpop.xlane.xlu0 %1134
          %v1136 = vmul.f32 %v1135, 14.285714
          %vm1137 = vcmask 7168
          %1138 = vst.msk [vmem:[%s9] sm:$0xff] %vm1137, %v1136
        $region68: #{tpu_custom_call.1} parent=43 // pred_fallthru
          _
        %s1139 = sand.u32 %s32, 1
        %s1140 = scalar_lea.sflag [#allocation4], %s1139
        %s1141 = sand.u32 %s228, 1
        %s1142 = smul.addr %s1141, 512
        %s1143 = scalar_lea.vmem [#allocation13], %s1142
        // Predicated region
        $region69: #{tpu_custom_call.1} parent=43 // pred_check
          %p1144 = pneg %p191
        $region70: #{tpu_custom_call.1} parent=43 // pred_check_branch
          %1146 = sbr.rel (%p1144) target = $region72
        $region71: #{tpu_custom_call.1} parent=43 // pred_region
          %s1148 = ssub.s32 128, 128
          %1149 = vsyncadd [#allocation4], %s1148
          %s1151 = sshll.u32 [#allocation10], 4
          %s1152 = int_to_ptr.vmem [resolvable:$true] %s1151
          %1154 = dma.vmem_to_hbm [thread:$0]  %s1152, 128, %s6, [#allocation4]
        $region72: #{tpu_custom_call.1} parent=43 // pred_fallthru
          _
        // Predicated region
        $region73: #{tpu_custom_call.1} parent=43 // pred_check
          %p1155 = pneg %p212
        $region74: #{tpu_custom_call.1} parent=43 // pred_check_branch
          %1157 = sbr.rel (%p1155) target = $region76
        $region75: #{tpu_custom_call.1} parent=43 // pred_region
          %s1159 = ssub.s32 128, 128
          %1160 = vsyncadd [#allocation12], %s1159
          %s1162 = sshll.u32 [#allocation11], 4
          %s1163 = int_to_ptr.vmem [resolvable:$true] %s1162
          %1165 = dma.vmem_to_hbm [thread:$0]  %s1163, 128, %s7, [#allocation12]
        $region76: #{tpu_custom_call.1} parent=43 // pred_fallthru
          _
        // Predicated region
        $region77: #{tpu_custom_call.1} parent=43 // pred_check
          %p1166 = pneg %p238
        $region78: #{tpu_custom_call.1} parent=43 // pred_check_branch
          %1168 = sbr.rel (%p1166) target = $region80
        $region79: #{tpu_custom_call.1} parent=43 // pred_region
          %s1169 = smul.u32 64, %s32
          %s1171 = ssub.s32 8192, 8192
          %1172 = vsyncadd %s1140, %s1171
          %s1173 = smul.addr %s1169, 128
          %s1174 = scalar_lea.hbm %s8, %s1173
          %s1175 = sshll.u32 %s1143, 4
          %s1176 = int_to_ptr.vmem [resolvable:$true] %s1175
          %1181 = dma.vmem_to_hbm [thread:$0]  %s1176, 8192, %s1174, %s1140, 128, 128, 8
        $region80: #{tpu_custom_call.1} parent=43 // pred_fallthru
          _
        // Predicated region
        $region81: #{tpu_custom_call.1} parent=43 // pred_check
          %p1182 = pneg %p259
        $region82: #{tpu_custom_call.1} parent=43 // pred_check_branch
          %1184 = sbr.rel (%p1182) target = $region84
        $region83: #{tpu_custom_call.1} parent=43 // pred_region
          _
        $region84: #{tpu_custom_call.1} parent=43 // pred_fallthru
          _
        // Predicated region
        $region85: #{tpu_custom_call.1} parent=43 // pred_check
          %p1185 = pneg %p191
        $region86: #{tpu_custom_call.1} parent=43 // pred_check_branch
          %1187 = sbr.rel (%p1185) target = $region88
        $region87: #{tpu_custom_call.1} parent=43 // pred_region
          %1188 = dma.done [#allocation4], 128
        $region88: #{tpu_custom_call.1} parent=43 // pred_fallthru
          _
        // Predicated region
        $region89: #{tpu_custom_call.1} parent=43 // pred_check
          %p1189 = pneg %p212
        $region90: #{tpu_custom_call.1} parent=43 // pred_check_branch
          %1191 = sbr.rel (%p1189) target = $region92
        $region91: #{tpu_custom_call.1} parent=43 // pred_region
          %1192 = dma.done [#allocation12], 128
        $region92: #{tpu_custom_call.1} parent=43 // pred_fallthru
          _
        // Predicated region
        $region93: #{tpu_custom_call.1} parent=43 // pred_check
          %p1193 = pneg %p259
        $region94: #{tpu_custom_call.1} parent=43 // pred_check_branch
          %1195 = sbr.rel (%p1193) target = $region96
        $region95: #{tpu_custom_call.1} parent=43 // pred_region
          _
        $region96: #{tpu_custom_call.1} parent=43 // pred_fallthru
          _
      $region44: #{tpu_custom_call.1} parent=5 // pred_fallthru
        _
      %p1196 = scmp.le.s32.totalorder 2, %s27
      // Predicated region
      $region97: #{tpu_custom_call.1} parent=5 // pred_check
        %p1197 = pneg %p1196
      $region98: #{tpu_custom_call.1} parent=5 // pred_check_branch
        %1199 = sbr.rel (%p1197) target = $region100
      $region99: #{tpu_custom_call.1} parent=5 // pred_region
        %s1200 = ssub.s32 %s27, 2
        // Predicated region
        $region101: #{tpu_custom_call.1} parent=99 // pred_check
          %p1201 = pneg %p244
        $region102: #{tpu_custom_call.1} parent=99 // pred_check_branch
          %1203 = sbr.rel (%p1201) target = $region104
        $region103: #{tpu_custom_call.1} parent=99 // pred_region
          %s1204 = sand.u32 %s33, 1
          %s1205 = scalar_lea.sflag [#allocation4], %s1204
          %s1206 = sand.u32 %s229, 1
          %s1207 = smul.addr %s1206, 512
          %s1208 = scalar_lea.vmem [#allocation13], %s1207
          %1209 = dma.done %s1205, 8192
        $region104: #{tpu_custom_call.1} parent=99 // pred_fallthru
          _
      $region100: #{tpu_custom_call.1} parent=5 // pred_fallthru
        _
    $region6: #{tpu_custom_call.1} parent=1 // loop_footer
      %s31 = sadd.s32 1, %s27
    $region7: #{tpu_custom_call.1} parent=1 // loop_footer_branch
      %26 = sbr.rel target = $region3
    $region8: #{tpu_custom_call.1} parent=1 // loop_exit
      _
    %1210 = vsyncpa [#allocation3], 1
    %s1211 = scalar_lea.sflag [#allocation3], 1
    %1212 = vsyncpa %s1211, 1
    %1213 = vsyncpa [#allocation6], 1
    %s1214 = scalar_lea.sflag [#allocation6], 1
    %1215 = vsyncpa %s1214, 1
    %1216 = vsyncpa [#allocation9], 1
    %s1217 = scalar_lea.sflag [#allocation9], 1
    %1218 = vsyncpa %s1217, 1
    %1219 = vsyncpa [#allocation4], 1
    %s1220 = scalar_lea.sflag [#allocation4], 1
    %1221 = vsyncpa %s1220, 1
    %1222 = vsyncpa [#allocation12], 1

</llo_original>
